<compile_context>
chip_gen: v7x
topology: tpu7x:2x2x1
jax: 0.10.0
libtpu: 0.0.40
codegen_flags: <defaults>
</compile_context>

<pallas_src>
import functools

import jax
import jax.numpy as jnp
from jax.experimental import pallas as pl
from jax.experimental.pallas import tpu as pltpu


# -----------------------------------------------------------------------------
# Shared in-kernel math
# -----------------------------------------------------------------------------

def _layernorm(x, w, b, eps=1e-5):
    mu = jnp.mean(x, axis=-1, keepdims=True)
    var = jnp.mean((x - mu) ** 2, axis=-1, keepdims=True)
    return (x - mu) * jax.lax.rsqrt(var + eps) * w + b


# -----------------------------------------------------------------------------
# Patch embedding: row-tiled linear (the Conv3d hot path IS this matmul)
# -----------------------------------------------------------------------------

def _linear_kernel(x_ref, w_ref, b_ref, o_ref):
    o_ref[...] = (
        jnp.dot(x_ref[...], w_ref[...], preferred_element_type=jnp.float32)
        + b_ref[...]
    ).astype(o_ref.dtype)


def linear_pallas(x, w, b, *, tm=256):
    """x @ w + b, tiled over rows of x. x: (M, K) bf16, w: (K, N) bf16, b: (N,) f32."""
    M, K = x.shape
    N = w.shape[1]
    tm = min(tm, M)
    single = pl.Buffered(1)   # weights/bias are grid-invariant: single-buffer them
    return pl.pallas_call(
        _linear_kernel,
        out_shape=jax.ShapeDtypeStruct((M, N), jnp.float32),
        grid=(pl.cdiv(M, tm),),          # partial last block clipped by Pallas (no pad copy)
        in_specs=[
            pl.BlockSpec((tm, K), lambda i: (i, 0)),
            pl.BlockSpec((K, N), lambda i: (0, 0), pipeline_mode=single),
            pl.BlockSpec((1, N), lambda i: (0, 0), pipeline_mode=single),
        ],
        out_specs=pl.BlockSpec((tm, N), lambda i: (i, 0)),
        compiler_params=pltpu.CompilerParams(dimension_semantics=("parallel",)),
    )(x, w, b.reshape(1, N))


# -----------------------------------------------------------------------------
# Fused encoder layer: LN -> attention -> residual -> LN -> MLP -> residual
# -----------------------------------------------------------------------------

def _encoder_layer_kernel(x_ref, ln1w_ref, ln1b_ref, wqkv_ref, wout_ref, bout_ref,
                          ln2w_ref, ln2b_ref, w1_ref, b1_ref, w2_ref, b2_ref,
                          o_ref, *, batch_block, seq, heads, dim_head):
    inner = heads * dim_head
    scale = dim_head ** -0.5
    x = x_ref[...]                                        # (Bb*S, D) f32 residual stream

    # ---- Attention ----
    xn = _layernorm(x, ln1w_ref[...], ln1b_ref[...])      # f32 stats
    qkv = jnp.dot(xn.astype(jnp.bfloat16), wqkv_ref[...],
                  preferred_element_type=jnp.float32)     # (Bb*S, 3*inner), f32 acc

    # Attention per batch row (small static loop); heads batched in one rank-3 einsum.
    # TODO(synk): for long (video) sequences replace the materialized (H, S, S) scores
    # with a KV-tiled online-softmax (flash-style) loop to drop the O(S^2) VMEM term.
    ctx_rows = []
    for b in range(batch_block):
        rows = slice(b * seq, (b + 1) * seq)
        # Fold softmax scale into q (O(S*inner)); bf16 operands on the MXU, f32 acc.
        qb = (qkv[rows, :inner] * scale).astype(jnp.bfloat16).reshape(seq, heads, dim_head)
        kb = qkv[rows, inner:2 * inner].astype(jnp.bfloat16).reshape(seq, heads, dim_head)
        vb = qkv[rows, 2 * inner:].astype(jnp.bfloat16).reshape(seq, heads, dim_head)
        s = jnp.einsum("qhd,khd->hqk", qb, kb,
                       preferred_element_type=jnp.float32)            # (H, S, S) f32
        s = s - jnp.max(s, axis=-1, keepdims=True)                    # softmax stays f32
        p = jnp.exp(s)
        p = p * pl.reciprocal(jnp.sum(p, axis=-1, keepdims=True), approx=True)
        ctx = jnp.einsum("hqk,khd->qhd", p.astype(jnp.bfloat16), vb,
                         preferred_element_type=jnp.float32)          # (S, H, dh) f32
        ctx_rows.append(ctx.reshape(seq, inner))
    ctx_all = ctx_rows[0] if batch_block == 1 else jnp.concatenate(ctx_rows, axis=0)

    attn_out = jnp.dot(ctx_all.astype(jnp.bfloat16), wout_ref[...],
                       preferred_element_type=jnp.float32) + bout_ref[...]
    x = x + attn_out                                                  # residual (f32)

    # ---- FeedForward ----
    xn2 = _layernorm(x, ln2w_ref[...], ln2b_ref[...])
    h = jnp.dot(xn2.astype(jnp.bfloat16), w1_ref[...],
                preferred_element_type=jnp.float32) + b1_ref[...]
    h = 0.5 * h * (1.0 + jax.lax.erf(h * (2.0 ** -0.5)))              # exact GELU, f32
    y = jnp.dot(h.astype(jnp.bfloat16), w2_ref[...],
                preferred_element_type=jnp.float32) + b2_ref[...]
    o_ref[...] = (x + y).astype(o_ref.dtype)                          # residual (f32)


def _pick_batch_block(batch, seq, max_bb=4):
    """Largest Bb <= max_bb with batch % Bb == 0 and (Bb*seq) % 8 == 0 so the (Bb*S, D)
    sublane block is spec-legal; fall back to the full batch (block == full array is
    always legal).  TODO(synk): pad S to a multiple of 8 (with attention masking) to
    allow small Bb when S is odd and the batch is large."""
    for bb in range(min(max_bb, batch), 0, -1):
        if batch % bb == 0 and (bb * seq) % 8 == 0:
            return bb
    return batch


def encoder_layer(x2d, lyr, *, batch, seq, heads, dim_head):
    BS, D = x2d.shape
    inner = heads * dim_head
    Hm = lyr["w1"].shape[1]
    Bb = _pick_batch_block(batch, seq)
    rows = Bb * seq
    kern = functools.partial(_encoder_layer_kernel, batch_block=Bb, seq=seq,
                             heads=heads, dim_head=dim_head)
    const = lambda i: (0, 0)
    single = pl.Buffered(1)   # constant-index weight/bias blocks: no double-buffering
    return pl.pallas_call(
        kern,
        out_shape=jax.ShapeDtypeStruct((BS, D), jnp.float32),
        grid=(batch // Bb,),
        in_specs=[
            pl.BlockSpec((rows, D), lambda i: (i, 0)),
            pl.BlockSpec((1, D), const, pipeline_mode=single),
            pl.BlockSpec((1, D), const, pipeline_mode=single),
            pl.BlockSpec((D, 3 * inner), const, pipeline_mode=single),
            pl.BlockSpec((inner, D), const, pipeline_mode=single),
            pl.BlockSpec((1, D), const, pipeline_mode=single),
            pl.BlockSpec((1, D), const, pipeline_mode=single),
            pl.BlockSpec((1, D), const, pipeline_mode=single),
            pl.BlockSpec((D, Hm), const, pipeline_mode=single),
            pl.BlockSpec((1, Hm), const, pipeline_mode=single),
            pl.BlockSpec((Hm, D), const, pipeline_mode=single),
            pl.BlockSpec((1, D), const, pipeline_mode=single),
        ],
        out_specs=pl.BlockSpec((rows, D), lambda i: (i, 0)),
        compiler_params=pltpu.CompilerParams(
            dimension_semantics=("parallel",),
            # Above the 16/32 MiB scoped defaults (v5e/v6e), below v7x's 64 MiB physical.
            vmem_limit_bytes=48 * 1024 * 1024),
    )(x2d,
      lyr["ln1_w"].reshape(1, D), lyr["ln1_b"].reshape(1, D),
      lyr["wqkv"].astype(jnp.bfloat16),
      lyr["wout"].astype(jnp.bfloat16), lyr["bout"].reshape(1, D),
      lyr["ln2_w"].reshape(1, D), lyr["ln2_b"].reshape(1, D),
      lyr["w1"].astype(jnp.bfloat16), lyr["b1"].reshape(1, Hm),
      lyr["w2"].astype(jnp.bfloat16), lyr["b2"].reshape(1, D))


# -----------------------------------------------------------------------------
# Final transformer LayerNorm (cls token) + classifier head
# -----------------------------------------------------------------------------

def _head_kernel(x_ref, lnw_ref, lnb_ref, w_ref, b_ref, o_ref):
    xn = _layernorm(x_ref[...], lnw_ref[...], lnb_ref[...])
    o_ref[...] = (jnp.dot(xn, w_ref[...], preferred_element_type=jnp.float32)
                  + b_ref[...]).astype(o_ref.dtype)


def head_pallas(x_cls, lnw, lnb, w, b):
    B, D = x_cls.shape
    C = w.shape[1]
    Cp = 128 * pl.cdiv(C, 128)          # lane-dense store (avoid vst.msk partial stores)
    if Cp != C:
        w = jnp.pad(w, ((0, 0), (0, Cp - C)))
        b = jnp.pad(b, ((0, Cp - C),))
    out = pl.pallas_call(
        _head_kernel,
        out_shape=jax.ShapeDtypeStruct((B, Cp), jnp.float32),
    )(x_cls, lnw.reshape(1, D), lnb.reshape(1, D), w, b.reshape(1, Cp))
    return out[:, :C]


# -----------------------------------------------------------------------------
# Parameters + forward (JAX glue around the Pallas kernels)
# -----------------------------------------------------------------------------

def init_params(key, *, channels, frame_patch, patch, num_patches, hidden_dim,
                mlp_dim, num_layers, heads, dim_head, num_classes):
    inner = heads * dim_head
    patch_dim = channels * frame_patch * patch * patch
    ks = jax.random.split(key, 8 + 8 * num_layers)
    it = iter(ks)
    p = {}
    # Conv3d patch embedding stored as (patch_dim, hidden_dim) matmul weight.
    p["conv_w"] = jax.random.normal(next(it), (patch_dim, hidden_dim), jnp.float32) * 0.02
    p["conv_b"] = jnp.zeros((hidden_dim,), jnp.float32)
    p["pos_embedding"] = jax.random.normal(next(it), (1, num_patches + 1, hidden_dim),
                                           jnp.float32)
    p["cls_token"] = jax.random.normal(next(it), (1, 1, hidden_dim), jnp.float32)
    layers = []
    for _ in range(num_layers):
        layers.append({
            "ln1_w": jnp.ones((hidden_dim,), jnp.float32),
            "ln1_b": jnp.zeros((hidden_dim,), jnp.float32),
            "wqkv": jax.random.normal(next(it), (hidden_dim, 3 * inner), jnp.float32) * 0.02,
            "wout": jax.random.normal(next(it), (inner, hidden_dim), jnp.float32) * 0.02,
            "bout": jnp.zeros((hidden_dim,), jnp.float32),
            "ln2_w": jnp.ones((hidden_dim,), jnp.float32),
            "ln2_b": jnp.zeros((hidden_dim,), jnp.float32),
            "w1": jax.random.normal(next(it), (hidden_dim, mlp_dim), jnp.float32) * 0.02,
            "b1": jnp.zeros((mlp_dim,), jnp.float32),
            "w2": jax.random.normal(next(it), (mlp_dim, hidden_dim), jnp.float32) * 0.02,
            "b2": jnp.zeros((hidden_dim,), jnp.float32),
        })
    p["layers"] = layers
    p["final_ln_w"] = jnp.ones((hidden_dim,), jnp.float32)
    p["final_ln_b"] = jnp.zeros((hidden_dim,), jnp.float32)
    p["head_w"] = jax.random.normal(next(it), (hidden_dim, num_classes), jnp.float32) * 0.02
    p["head_b"] = jnp.zeros((num_classes,), jnp.float32)
    return p


def vit_forward(img, params, *, frame_patch, patch, hidden_dim, heads, dim_head):
    # img is (B, C, frames, H, W)  (PyTorch NCDHW).
    B, C, F, Hh, Ww = img.shape
    fp, ph, pw = frame_patch, patch, patch
    # Patch extraction == Conv3d(stride == kernel) + flatten(2).transpose(1, 2).
    x = img.reshape(B, C, F // fp, fp, Hh // ph, ph, Ww // pw, pw)
    x = x.transpose(0, 2, 4, 6, 1, 3, 5, 7)                # (B, F', H', W', C, fp, ph, pw)
    patches = x.reshape(B, -1, C * fp * ph * pw)           # (B, N, patch_dim)
    N = patches.shape[1]

    emb = linear_pallas(patches.reshape(B * N, -1).astype(jnp.bfloat16),
                        params["conv_w"].astype(jnp.bfloat16),
                        params["conv_b"]).reshape(B, N, hidden_dim)

    cls = jnp.broadcast_to(params["cls_token"], (B, 1, hidden_dim))
    x = jnp.concatenate([cls, emb], axis=1)                # (B, N+1, D)
    x = x + params["pos_embedding"][:, :N + 1]
    # emb_dropout = 0.0 -> identity
    S = N + 1
    x2d = x.reshape(B * S, hidden_dim)                     # 2-D residual stream (f32)

    for lyr in params["layers"]:
        x2d = encoder_layer(x2d, lyr, batch=B, seq=S, heads=heads, dim_head=dim_head)

    # Transformer's final LayerNorm is per-token, so LN-then-pool(cls) == LN(cls).
    x_cls = x2d.reshape(B, S, hidden_dim)[:, 0]            # (B, D), pool='cls'
    return head_pallas(x_cls, params["final_ln_w"], params["final_ln_b"],
                       params["head_w"], params["head_b"])


# -----------------------------------------------------------------------------
# Main
# -----------------------------------------------------------------------------

if __name__ == "__main__":
    # Small but shape-consistent configuration (lane-dense D, inner, mlp dims).
    image_size = 16
    image_patch_size = 8
    frames = 4
    frame_patch_size = 2
    channels = 3
    num_classes = 5
    dim = 128
    mlp_dim = 256
    depth = 2
    num_heads = 2
    dim_head = 64
    num_patches = (image_size // image_patch_size) ** 2 * (frames // frame_patch_size)  # 8

    key = jax.random.PRNGKey(0)
    k_param, k_img = jax.random.split(key)
    params = init_params(
        k_param, channels=channels, frame_patch=frame_patch_size,
        patch=image_patch_size, num_patches=num_patches, hidden_dim=dim,
        mlp_dim=mlp_dim, num_layers=depth, heads=num_heads, dim_head=dim_head,
        num_classes=num_classes)

    img = jax.random.normal(k_img, (2, channels, frames, image_size, image_size),
                            jnp.float32)  # NCDHW

    fwd = jax.jit(functools.partial(
        vit_forward, frame_patch=frame_patch_size, patch=image_patch_size,
        hidden_dim=dim, heads=num_heads, dim_head=dim_head))

    logits = fwd(img, params)
    jax.block_until_ready(logits)
    assert logits.shape == (2, num_classes)
    print("KERNEL_OK")
</pallas_src>

<mosaic_0001>
module attributes {stable_mosaic.version = 11 : i64} {
  func.func @_linear_kernel(%arg0: i32, %arg1: memref<16x384xbf16, #tpu.memory_space<vmem>>, %arg2: memref<384x128xbf16, #tpu.memory_space<vmem>>, %arg3: memref<1x128xf32, #tpu.memory_space<vmem>>, %arg4: memref<16x128xf32, #tpu.memory_space<vmem>>) attributes {dimension_semantics = [#tpu.dimension_semantics<parallel>], iteration_bounds = array<i64: 1>, scalar_prefetch = 0 : i64, scratch_operands = 0 : i64, tpu.core_type = #tpu.core_type<tc>, window_params = [{transform_indices = @transform_0, window_bounds = array<i64: 16, 384>}, {pipeline_mode = #tpu.pipeline_mode<synchronous>, transform_indices = @transform_1, window_bounds = array<i64: 384, 128>}, {pipeline_mode = #tpu.pipeline_mode<synchronous>, transform_indices = @transform_2, window_bounds = array<i64: 1, 128>}, {transform_indices = @transform_3, window_bounds = array<i64: 16, 128>}]} {
    %c0 = arith.constant 0 : index
    %c0_0 = arith.constant 0 : index
    %0 = vector.load %arg1[%c0, %c0_0] : memref<16x384xbf16, #tpu.memory_space<vmem>>, vector<16x384xbf16>
    %c0_1 = arith.constant 0 : index
    %c0_2 = arith.constant 0 : index
    %1 = vector.load %arg2[%c0_1, %c0_2] : memref<384x128xbf16, #tpu.memory_space<vmem>>, vector<384x128xbf16>
    %cst = arith.constant dense<0.000000e+00> : vector<16x128xf32>
    %2 = tpu.matmul %0, %1, %cst {dimension_numbers = #tpu.dot_dimension_numbers<[1], [0], [0], [1], [0, 0, 1, 1], [], []>} : vector<16x384xbf16>, vector<384x128xbf16>, vector<16x128xf32> -> vector<16x128xf32>
    %c0_3 = arith.constant 0 : index
    %c0_4 = arith.constant 0 : index
    %3 = vector.load %arg3[%c0_3, %c0_4] : memref<1x128xf32, #tpu.memory_space<vmem>>, vector<1x128xf32>
    %4 = vector.broadcast %3 : vector<1x128xf32> to vector<16x128xf32>
    %5 = arith.addf %2, %4 : vector<16x128xf32>
    %c0_5 = arith.constant 0 : index
    %c0_6 = arith.constant 0 : index
    %6 = vector.load %arg4[%c0_5, %c0_6] : memref<16x128xf32, #tpu.memory_space<vmem>>, vector<16x128xf32>
    tpu.vector_store %arg4[%c0_5, %c0_6], %5 {strides = array<i32>} : memref<16x128xf32, #tpu.memory_space<vmem>>, vector<16x128xf32>,
    return
  }
  func.func @transform_0(%arg0: i32) -> (i32, i32) {
    %c0_i32 = arith.constant 0 : i32
    %c0_i32_0 = arith.constant 0 : i32
    return %arg0, %c0_i32 : i32, i32
  }
  func.func @transform_1(%arg0: i32) -> (i32, i32) {
    %c0_i32 = arith.constant 0 : i32
    %c0_i32_0 = arith.constant 0 : i32
    %c0_i32_1 = arith.constant 0 : i32
    return %c0_i32, %c0_i32_0 : i32, i32
  }
  func.func @transform_2(%arg0: i32) -> (i32, i32) {
    %c0_i32 = arith.constant 0 : i32
    %c0_i32_0 = arith.constant 0 : i32
    %c0_i32_1 = arith.constant 0 : i32
    return %c0_i32, %c0_i32_0 : i32, i32
  }
  func.func @transform_3(%arg0: i32) -> (i32, i32) {
    %c0_i32 = arith.constant 0 : i32
    %c0_i32_0 = arith.constant 0 : i32
    return %arg0, %c0_i32 : i32, i32
  }
}

module attributes {stable_mosaic.version = 11 : i64} {
  func.func @_encoder_layer_kernel(%arg0: i32, %arg1: memref<18x128xf32, #tpu.memory_space<vmem>>, %arg2: memref<1x128xf32, #tpu.memory_space<vmem>>, %arg3: memref<1x128xf32, #tpu.memory_space<vmem>>, %arg4: memref<128x384xbf16, #tpu.memory_space<vmem>>, %arg5: memref<128x128xbf16, #tpu.memory_space<vmem>>, %arg6: memref<1x128xf32, #tpu.memory_space<vmem>>, %arg7: memref<1x128xf32, #tpu.memory_space<vmem>>, %arg8: memref<1x128xf32, #tpu.memory_space<vmem>>, %arg9: memref<128x256xbf16, #tpu.memory_space<vmem>>, %arg10: memref<1x256xf32, #tpu.memory_space<vmem>>, %arg11: memref<256x128xbf16, #tpu.memory_space<vmem>>, %arg12: memref<1x128xf32, #tpu.memory_space<vmem>>, %arg13: memref<18x128xf32, #tpu.memory_space<vmem>>) attributes {dimension_semantics = [#tpu.dimension_semantics<parallel>], iteration_bounds = array<i64: 1>, scalar_prefetch = 0 : i64, scratch_operands = 0 : i64, tpu.core_type = #tpu.core_type<tc>, window_params = [{transform_indices = @transform_0, window_bounds = array<i64: 18, 128>}, {pipeline_mode = #tpu.pipeline_mode<synchronous>, transform_indices = @transform_1, window_bounds = array<i64: 1, 128>}, {pipeline_mode = #tpu.pipeline_mode<synchronous>, transform_indices = @transform_2, window_bounds = array<i64: 1, 128>}, {pipeline_mode = #tpu.pipeline_mode<synchronous>, transform_indices = @transform_3, window_bounds = array<i64: 128, 384>}, {pipeline_mode = #tpu.pipeline_mode<synchronous>, transform_indices = @transform_4, window_bounds = array<i64: 128, 128>}, {pipeline_mode = #tpu.pipeline_mode<synchronous>, transform_indices = @transform_5, window_bounds = array<i64: 1, 128>}, {pipeline_mode = #tpu.pipeline_mode<synchronous>, transform_indices = @transform_6, window_bounds = array<i64: 1, 128>}, {pipeline_mode = #tpu.pipeline_mode<synchronous>, transform_indices = @transform_7, window_bounds = array<i64: 1, 128>}, {pipeline_mode = #tpu.pipeline_mode<synchronous>, transform_indices = @transform_8, window_bounds = array<i64: 128, 256>}, {pipeline_mode = #tpu.pipeline_mode<synchronous>, transform_indices = @transform_9, window_bounds = array<i64: 1, 256>}, {pipeline_mode = #tpu.pipeline_mode<synchronous>, transform_indices = @transform_10, window_bounds = array<i64: 256, 128>}, {pipeline_mode = #tpu.pipeline_mode<synchronous>, transform_indices = @transform_11, window_bounds = array<i64: 1, 128>}, {transform_indices = @transform_12, window_bounds = array<i64: 18, 128>}]} {
    %c0 = arith.constant 0 : index
    %c0_0 = arith.constant 0 : index
    %0 = vector.load %arg1[%c0, %c0_0] : memref<18x128xf32, #tpu.memory_space<vmem>>, vector<18x128xf32>
    %c0_1 = arith.constant 0 : index
    %c0_2 = arith.constant 0 : index
    %1 = vector.load %arg2[%c0_1, %c0_2] : memref<1x128xf32, #tpu.memory_space<vmem>>, vector<1x128xf32>
    %c0_3 = arith.constant 0 : index
    %c0_4 = arith.constant 0 : index
    %2 = vector.load %arg3[%c0_3, %c0_4] : memref<1x128xf32, #tpu.memory_space<vmem>>, vector<1x128xf32>
    %cst = arith.constant dense<0.000000e+00> : vector<18xf32>
    %3 = vector.multi_reduction <add>, %0, %cst [1] : vector<18x128xf32> to vector<18xf32>
    %4 = vector.shape_cast %3 : vector<18xf32> to vector<18x1xf32>
    %cst_5 = arith.constant 1.280000e+02 : f32
    %5 = vector.broadcast %cst_5 : f32 to vector<18x1xf32>
    %6 = arith.divf %4, %5 : vector<18x1xf32>
    %7 = vector.broadcast %6 : vector<18x1xf32> to vector<18x128xf32>
    %8 = arith.subf %0, %7 : vector<18x128xf32>
    %9 = arith.mulf %8, %8 : vector<18x128xf32>
    %cst_6 = arith.constant dense<0.000000e+00> : vector<18xf32>
    %10 = vector.multi_reduction <add>, %9, %cst_6 [1] : vector<18x128xf32> to vector<18xf32>
    %11 = vector.shape_cast %10 : vector<18xf32> to vector<18x1xf32>
    %cst_7 = arith.constant 1.280000e+02 : f32
    %12 = vector.broadcast %cst_7 : f32 to vector<18x1xf32>
    %13 = arith.divf %11, %12 : vector<18x1xf32>
    %14 = vector.broadcast %6 : vector<18x1xf32> to vector<18x128xf32>
    %15 = arith.subf %0, %14 : vector<18x128xf32>
    %cst_8 = arith.constant 9.99999974E-6 : f32
    %16 = vector.broadcast %cst_8 : f32 to vector<18x1xf32>
    %17 = arith.addf %13, %16 : vector<18x1xf32>
    %18 = math.rsqrt %17 : vector<18x1xf32>
    %19 = vector.broadcast %18 : vector<18x1xf32> to vector<18x128xf32>
    %20 = arith.mulf %15, %19 : vector<18x128xf32>
    %21 = vector.broadcast %1 : vector<1x128xf32> to vector<18x128xf32>
    %22 = arith.mulf %20, %21 : vector<18x128xf32>
    %23 = vector.broadcast %2 : vector<1x128xf32> to vector<18x128xf32>
    %24 = arith.addf %22, %23 : vector<18x128xf32>
    %25 = arith.truncf %24 : vector<18x128xf32> to vector<18x128xbf16>
    %c0_9 = arith.constant 0 : index
    %c0_10 = arith.constant 0 : index
    %26 = vector.load %arg4[%c0_9, %c0_10] : memref<128x384xbf16, #tpu.memory_space<vmem>>, vector<128x384xbf16>
    %cst_11 = arith.constant dense<0.000000e+00> : vector<18x384xf32>
    %27 = tpu.matmul %25, %26, %cst_11 {dimension_numbers = #tpu.dot_dimension_numbers<[1], [0], [0], [1], [0, 0, 1, 1], [], []>} : vector<18x128xbf16>, vector<128x384xbf16>, vector<18x384xf32> -> vector<18x384xf32>
    %28 = vector.extract_strided_slice %27 {offsets = [0, 0], sizes = [9, 128], strides = [1, 1]} : vector<18x384xf32> to vector<9x128xf32>
    %cst_12 = arith.constant 1.250000e-01 : f32
    %29 = vector.broadcast %cst_12 : f32 to vector<9x128xf32>
    %30 = arith.mulf %28, %29 : vector<9x128xf32>
    %31 = arith.truncf %30 : vector<9x128xf32> to vector<9x128xbf16>
    %32 = vector.shape_cast %31 : vector<9x128xbf16> to vector<9x2x64xbf16>
    %33 = vector.extract_strided_slice %27 {offsets = [0, 128], sizes = [9, 128], strides = [1, 1]} : vector<18x384xf32> to vector<9x128xf32>
    %34 = arith.truncf %33 : vector<9x128xf32> to vector<9x128xbf16>
    %35 = vector.shape_cast %34 : vector<9x128xbf16> to vector<9x2x64xbf16>
    %36 = vector.extract_strided_slice %27 {offsets = [0, 256], sizes = [9, 128], strides = [1, 1]} : vector<18x384xf32> to vector<9x128xf32>
    %37 = arith.truncf %36 : vector<9x128xf32> to vector<9x128xbf16>
    %38 = vector.shape_cast %37 : vector<9x128xbf16> to vector<9x2x64xbf16>
    "tpu.trace_start"() <{level = 10 : i32, message = "qhd,khd->hqk"}> : () -> ()
    %cst_13 = arith.constant dense<0.000000e+00> : vector<2x9x9xf32>
    %39 = tpu.matmul %32, %35, %cst_13 {dimension_numbers = #tpu.dot_dimension_numbers<[2], [2], [0], [0], [0, 1, 0, 0, 1, 0], [1], [1]>} : vector<9x2x64xbf16>, vector<9x2x64xbf16>, vector<2x9x9xf32> -> vector<2x9x9xf32>
    "tpu.trace_stop"() : () -> ()
    %cst_14 = arith.constant dense<0xFF800000> : vector<2x9xf32>
    %40 = vector.multi_reduction <maximumf>, %39, %cst_14 [2] : vector<2x9x9xf32> to vector<2x9xf32>
    %41 = vector.shape_cast %40 : vector<2x9xf32> to vector<2x9x1xf32>
    %42 = vector.broadcast %41 : vector<2x9x1xf32> to vector<2x9x9xf32>
    %43 = arith.subf %39, %42 : vector<2x9x9xf32>
    %44 = math.exp %43 : vector<2x9x9xf32>
    %cst_15 = arith.constant dense<0.000000e+00> : vector<2x9xf32>
    %45 = vector.multi_reduction <add>, %44, %cst_15 [2] : vector<2x9x9xf32> to vector<2x9xf32>
    %46 = vector.shape_cast %45 : vector<2x9xf32> to vector<2x9x1xf32>
    %47 = tpu.reciprocal %46 {approx = true} : vector<2x9x1xf32> -> vector<2x9x1xf32>
    %48 = vector.broadcast %47 : vector<2x9x1xf32> to vector<2x9x9xf32>
    %49 = arith.mulf %44, %48 : vector<2x9x9xf32>
    %50 = arith.truncf %49 : vector<2x9x9xf32> to vector<2x9x9xbf16>
    "tpu.trace_start"() <{level = 10 : i32, message = "hqk,khd->qhd"}> : () -> ()
    %cst_16 = arith.constant dense<0.000000e+00> : vector<2x64x9xf32>
    %51 = tpu.matmul %38, %50, %cst_16 {dimension_numbers = #tpu.dot_dimension_numbers<[0], [2], [2], [1], [0, 1, 0, 2, 1, 1], [1], [0]>} : vector<9x2x64xbf16>, vector<2x9x9xbf16>, vector<2x64x9xf32> -> vector<2x64x9xf32>
    %52 = tpu.transpose %51, [2, 0, 1] : vector<2x64x9xf32> -> vector<9x2x64xf32>
    "tpu.trace_stop"() : () -> ()
    %53 = vector.shape_cast %52 : vector<9x2x64xf32> to vector<9x128xf32>
    %54 = vector.extract_strided_slice %27 {offsets = [9, 0], sizes = [9, 128], strides = [1, 1]} : vector<18x384xf32> to vector<9x128xf32>
    %cst_17 = arith.constant 1.250000e-01 : f32
    %55 = vector.broadcast %cst_17 : f32 to vector<9x128xf32>
    %56 = arith.mulf %54, %55 : vector<9x128xf32>
    %57 = arith.truncf %56 : vector<9x128xf32> to vector<9x128xbf16>
    %58 = vector.shape_cast %57 : vector<9x128xbf16> to vector<9x2x64xbf16>
    %59 = vector.extract_strided_slice %27 {offsets = [9, 128], sizes = [9, 128], strides = [1, 1]} : vector<18x384xf32> to vector<9x128xf32>
    %60 = arith.truncf %59 : vector<9x128xf32> to vector<9x128xbf16>
    %61 = vector.shape_cast %60 : vector<9x128xbf16> to vector<9x2x64xbf16>
    %62 = vector.extract_strided_slice %27 {offsets = [9, 256], sizes = [9, 128], strides = [1, 1]} : vector<18x384xf32> to vector<9x128xf32>
    %63 = arith.truncf %62 : vector<9x128xf32> to vector<9x128xbf16>
    %64 = vector.shape_cast %63 : vector<9x128xbf16> to vector<9x2x64xbf16>
    "tpu.trace_start"() <{level = 10 : i32, message = "qhd,khd->hqk"}> : () -> ()
    %cst_18 = arith.constant dense<0.000000e+00> : vector<2x9x9xf32>
    %65 = tpu.matmul %58, %61, %cst_18 {dimension_numbers = #tpu.dot_dimension_numbers<[2], [2], [0], [0], [0, 1, 0, 0, 1, 0], [1], [1]>} : vector<9x2x64xbf16>, vector<9x2x64xbf16>, vector<2x9x9xf32> -> vector<2x9x9xf32>
    "tpu.trace_stop"() : () -> ()
    %cst_19 = arith.constant dense<0xFF800000> : vector<2x9xf32>
    %66 = vector.multi_reduction <maximumf>, %65, %cst_19 [2] : vector<2x9x9xf32> to vector<2x9xf32>
    %67 = vector.shape_cast %66 : vector<2x9xf32> to vector<2x9x1xf32>
    %68 = vector.broadcast %67 : vector<2x9x1xf32> to vector<2x9x9xf32>
    %69 = arith.subf %65, %68 : vector<2x9x9xf32>
    %70 = math.exp %69 : vector<2x9x9xf32>
    %cst_20 = arith.constant dense<0.000000e+00> : vector<2x9xf32>
    %71 = vector.multi_reduction <add>, %70, %cst_20 [2] : vector<2x9x9xf32> to vector<2x9xf32>
    %72 = vector.shape_cast %71 : vector<2x9xf32> to vector<2x9x1xf32>
    %73 = tpu.reciprocal %72 {approx = true} : vector<2x9x1xf32> -> vector<2x9x1xf32>
    %74 = vector.broadcast %73 : vector<2x9x1xf32> to vector<2x9x9xf32>
    %75 = arith.mulf %70, %74 : vector<2x9x9xf32>
    %76 = arith.truncf %75 : vector<2x9x9xf32> to vector<2x9x9xbf16>
    "tpu.trace_start"() <{level = 10 : i32, message = "hqk,khd->qhd"}> : () -> ()
    %cst_21 = arith.constant dense<0.000000e+00> : vector<2x64x9xf32>
    %77 = tpu.matmul %64, %76, %cst_21 {dimension_numbers = #tpu.dot_dimension_numbers<[0], [2], [2], [1], [0, 1, 0, 2, 1, 1], [1], [0]>} : vector<9x2x64xbf16>, vector<2x9x9xbf16>, vector<2x64x9xf32> -> vector<2x64x9xf32>
    %78 = tpu.transpose %77, [2, 0, 1] : vector<2x64x9xf32> -> vector<9x2x64xf32>
    "tpu.trace_stop"() : () -> ()
    %79 = vector.shape_cast %78 : vector<9x2x64xf32> to vector<9x128xf32>
    %80 = tpu.concatenate %53, %79 in 0 : vector<9x128xf32>, vector<9x128xf32> -> vector<18x128xf32>
    %81 = arith.truncf %80 : vector<18x128xf32> to vector<18x128xbf16>
    %c0_22 = arith.constant 0 : index
    %c0_23 = arith.constant 0 : index
    %82 = vector.load %arg5[%c0_22, %c0_23] : memref<128x128xbf16, #tpu.memory_space<vmem>>, vector<128x128xbf16>
    %cst_24 = arith.constant dense<0.000000e+00> : vector<18x128xf32>
    %83 = tpu.matmul %81, %82, %cst_24 {dimension_numbers = #tpu.dot_dimension_numbers<[1], [0], [0], [1], [0, 0, 1, 1], [], []>} : vector<18x128xbf16>, vector<128x128xbf16>, vector<18x128xf32> -> vector<18x128xf32>
    %c0_25 = arith.constant 0 : index
    %c0_26 = arith.constant 0 : index
    %84 = vector.load %arg6[%c0_25, %c0_26] : memref<1x128xf32, #tpu.memory_space<vmem>>, vector<1x128xf32>
    %85 = vector.broadcast %84 : vector<1x128xf32> to vector<18x128xf32>
    %86 = arith.addf %83, %85 : vector<18x128xf32>
    %87 = arith.addf %0, %86 : vector<18x128xf32>
    %c0_27 = arith.constant 0 : index
    %c0_28 = arith.constant 0 : index
    %88 = vector.load %arg7[%c0_27, %c0_28] : memref<1x128xf32, #tpu.memory_space<vmem>>, vector<1x128xf32>
    %c0_29 = arith.constant 0 : index
    %c0_30 = arith.constant 0 : index
    %89 = vector.load %arg8[%c0_29, %c0_30] : memref<1x128xf32, #tpu.memory_space<vmem>>, vector<1x128xf32>
    %cst_31 = arith.constant dense<0.000000e+00> : vector<18xf32>
    %90 = vector.multi_reduction <add>, %87, %cst_31 [1] : vector<18x128xf32> to vector<18xf32>
    %91 = vector.shape_cast %90 : vector<18xf32> to vector<18x1xf32>
    %cst_32 = arith.constant 1.280000e+02 : f32
    %92 = vector.broadcast %cst_32 : f32 to vector<18x1xf32>
    %93 = arith.divf %91, %92 : vector<18x1xf32>
    %94 = vector.broadcast %93 : vector<18x1xf32> to vector<18x128xf32>
    %95 = arith.subf %87, %94 : vector<18x128xf32>
    %96 = arith.mulf %95, %95 : vector<18x128xf32>
    %cst_33 = arith.constant dense<0.000000e+00> : vector<18xf32>
    %97 = vector.multi_reduction <add>, %96, %cst_33 [1] : vector<18x128xf32> to vector<18xf32>
    %98 = vector.shape_cast %97 : vector<18xf32> to vector<18x1xf32>
    %cst_34 = arith.constant 1.280000e+02 : f32
    %99 = vector.broadcast %cst_34 : f32 to vector<18x1xf32>
    %100 = arith.divf %98, %99 : vector<18x1xf32>
    %101 = vector.broadcast %93 : vector<18x1xf32> to vector<18x128xf32>
    %102 = arith.subf %87, %101 : vector<18x128xf32>
    %cst_35 = arith.constant 9.99999974E-6 : f32
    %103 = vector.broadcast %cst_35 : f32 to vector<18x1xf32>
    %104 = arith.addf %100, %103 : vector<18x1xf32>
    %105 = math.rsqrt %104 : vector<18x1xf32>
    %106 = vector.broadcast %105 : vector<18x1xf32> to vector<18x128xf32>
    %107 = arith.mulf %102, %106 : vector<18x128xf32>
    %108 = vector.broadcast %88 : vector<1x128xf32> to vector<18x128xf32>
    %109 = arith.mulf %107, %108 : vector<18x128xf32>
    %110 = vector.broadcast %89 : vector<1x128xf32> to vector<18x128xf32>
    %111 = arith.addf %109, %110 : vector<18x128xf32>
    %112 = arith.truncf %111 : vector<18x128xf32> to vector<18x128xbf16>
    %c0_36 = arith.constant 0 : index
    %c0_37 = arith.constant 0 : index
    %113 = vector.load %arg9[%c0_36, %c0_37] : memref<128x256xbf16, #tpu.memory_space<vmem>>, vector<128x256xbf16>
    %cst_38 = arith.constant dense<0.000000e+00> : vector<18x256xf32>
    %114 = tpu.matmul %112, %113, %cst_38 {dimension_numbers = #tpu.dot_dimension_numbers<[1], [0], [0], [1], [0, 0, 1, 1], [], []>} : vector<18x128xbf16>, vector<128x256xbf16>, vector<18x256xf32> -> vector<18x256xf32>
    %c0_39 = arith.constant 0 : index
    %c0_40 = arith.constant 0 : index
    %115 = vector.load %arg10[%c0_39, %c0_40] : memref<1x256xf32, #tpu.memory_space<vmem>>, vector<1x256xf32>
    %116 = vector.broadcast %115 : vector<1x256xf32> to vector<18x256xf32>
    %117 = arith.addf %114, %116 : vector<18x256xf32>
    %cst_41 = arith.constant 5.000000e-01 : f32
    %118 = vector.broadcast %cst_41 : f32 to vector<18x256xf32>
    %119 = arith.mulf %118, %117 : vector<18x256xf32>
    %cst_42 = arith.constant 0.707106769 : f32
    %120 = vector.broadcast %cst_42 : f32 to vector<18x256xf32>
    %121 = arith.mulf %117, %120 : vector<18x256xf32>
    %122 = math.erf %121 : vector<18x256xf32>
    %cst_43 = arith.constant 1.000000e+00 : f32
    %123 = vector.broadcast %cst_43 : f32 to vector<18x256xf32>
    %124 = arith.addf %123, %122 : vector<18x256xf32>
    %125 = arith.mulf %119, %124 : vector<18x256xf32>
    %126 = arith.truncf %125 : vector<18x256xf32> to vector<18x256xbf16>
    %c0_44 = arith.constant 0 : index
    %c0_45 = arith.constant 0 : index
    %127 = vector.load %arg11[%c0_44, %c0_45] : memref<256x128xbf16, #tpu.memory_space<vmem>>, vector<256x128xbf16>
    %cst_46 = arith.constant dense<0.000000e+00> : vector<18x128xf32>
    %128 = tpu.matmul %126, %127, %cst_46 {dimension_numbers = #tpu.dot_dimension_numbers<[1], [0], [0], [1], [0, 0, 1, 1], [], []>} : vector<18x256xbf16>, vector<256x128xbf16>, vector<18x128xf32> -> vector<18x128xf32>
    %c0_47 = arith.constant 0 : index
    %c0_48 = arith.constant 0 : index
    %129 = vector.load %arg12[%c0_47, %c0_48] : memref<1x128xf32, #tpu.memory_space<vmem>>, vector<1x128xf32>
    %130 = vector.broadcast %129 : vector<1x128xf32> to vector<18x128xf32>
    %131 = arith.addf %128, %130 : vector<18x128xf32>
    %132 = arith.addf %87, %131 : vector<18x128xf32>
    %c0_49 = arith.constant 0 : index
    %c0_50 = arith.constant 0 : index
    %133 = vector.load %arg13[%c0_49, %c0_50] : memref<18x128xf32, #tpu.memory_space<vmem>>, vector<18x128xf32>
    tpu.vector_store %arg13[%c0_49, %c0_50], %132 {strides = array<i32>} : memref<18x128xf32, #tpu.memory_space<vmem>>, vector<18x128xf32>,
    return
  }
  func.func @transform_0(%arg0: i32) -> (i32, i32) {
    %c0_i32 = arith.constant 0 : i32
    %c0_i32_0 = arith.constant 0 : i32
    return %arg0, %c0_i32 : i32, i32
  }
  func.func @transform_1(%arg0: i32) -> (i32, i32) {
    %c0_i32 = arith.constant 0 : i32
    %c0_i32_0 = arith.constant 0 : i32
    %c0_i32_1 = arith.constant 0 : i32
    return %c0_i32, %c0_i32_0 : i32, i32
  }
  func.func @transform_2(%arg0: i32) -> (i32, i32) {
    %c0_i32 = arith.constant 0 : i32
    %c0_i32_0 = arith.constant 0 : i32
    %c0_i32_1 = arith.constant 0 : i32
    return %c0_i32, %c0_i32_0 : i32, i32
  }
  func.func @transform_3(%arg0: i32) -> (i32, i32) {
    %c0_i32 = arith.constant 0 : i32
    %c0_i32_0 = arith.constant 0 : i32
    %c0_i32_1 = arith.constant 0 : i32
    return %c0_i32, %c0_i32_0 : i32, i32
  }
  func.func @transform_4(%arg0: i32) -> (i32, i32) {
    %c0_i32 = arith.constant 0 : i32
    %c0_i32_0 = arith.constant 0 : i32
    %c0_i32_1 = arith.constant 0 : i32
    return %c0_i32, %c0_i32_0 : i32, i32
  }
  func.func @transform_5(%arg0: i32) -> (i32, i32) {
    %c0_i32 = arith.constant 0 : i32
    %c0_i32_0 = arith.constant 0 : i32
    %c0_i32_1 = arith.constant 0 : i32
    return %c0_i32, %c0_i32_0 : i32, i32
  }
  func.func @transform_6(%arg0: i32) -> (i32, i32) {
    %c0_i32 = arith.constant 0 : i32
    %c0_i32_0 = arith.constant 0 : i32
    %c0_i32_1 = arith.constant 0 : i32
    return %c0_i32, %c0_i32_0 : i32, i32
  }
  func.func @transform_7(%arg0: i32) -> (i32, i32) {
    %c0_i32 = arith.constant 0 : i32
    %c0_i32_0 = arith.constant 0 : i32
    %c0_i32_1 = arith.constant 0 : i32
    return %c0_i32, %c0_i32_0 : i32, i32
  }
  func.func @transform_8(%arg0: i32) -> (i32, i32) {
    %c0_i32 = arith.constant 0 : i32
    %c0_i32_0 = arith.constant 0 : i32
    %c0_i32_1 = arith.constant 0 : i32
    return %c0_i32, %c0_i32_0 : i32, i32
  }
  func.func @transform_9(%arg0: i32) -> (i32, i32) {
    %c0_i32 = arith.constant 0 : i32
    %c0_i32_0 = arith.constant 0 : i32
    %c0_i32_1 = arith.constant 0 : i32
    return %c0_i32, %c0_i32_0 : i32, i32
  }
  func.func @transform_10(%arg0: i32) -> (i32, i32) {
    %c0_i32 = arith.constant 0 : i32
    %c0_i32_0 = arith.constant 0 : i32
    %c0_i32_1 = arith.constant 0 : i32
    return %c0_i32, %c0_i32_0 : i32, i32
  }
  func.func @transform_11(%arg0: i32) -> (i32, i32) {
    %c0_i32 = arith.constant 0 : i32
    %c0_i32_0 = arith.constant 0 : i32
    %c0_i32_1 = arith.constant 0 : i32
    return %c0_i32, %c0_i32_0 : i32, i32
  }
  func.func @transform_12(%arg0: i32) -> (i32, i32) {
    %c0_i32 = arith.constant 0 : i32
    %c0_i32_0 = arith.constant 0 : i32
    return %arg0, %c0_i32 : i32, i32
  }
}

module attributes {stable_mosaic.version = 11 : i64} {
  func.func @_head_kernel(%arg0: memref<2x128xf32, #tpu.memory_space<vmem>>, %arg1: memref<1x128xf32, #tpu.memory_space<vmem>>, %arg2: memref<1x128xf32, #tpu.memory_space<vmem>>, %arg3: memref<128x128xf32, #tpu.memory_space<vmem>>, %arg4: memref<1x128xf32, #tpu.memory_space<vmem>>, %arg5: memref<2x128xf32, #tpu.memory_space<vmem>>) attributes {dimension_semantics = [], scalar_prefetch = 0 : i64, scratch_operands = 0 : i64, tpu.core_type = #tpu.core_type<tc>} {
    %c0 = arith.constant 0 : index
    %c0_0 = arith.constant 0 : index
    %0 = vector.load %arg0[%c0, %c0_0] : memref<2x128xf32, #tpu.memory_space<vmem>>, vector<2x128xf32>
    %c0_1 = arith.constant 0 : index
    %c0_2 = arith.constant 0 : index
    %1 = vector.load %arg1[%c0_1, %c0_2] : memref<1x128xf32, #tpu.memory_space<vmem>>, vector<1x128xf32>
    %c0_3 = arith.constant 0 : index
    %c0_4 = arith.constant 0 : index
    %2 = vector.load %arg2[%c0_3, %c0_4] : memref<1x128xf32, #tpu.memory_space<vmem>>, vector<1x128xf32>
    %cst = arith.constant dense<0.000000e+00> : vector<2xf32>
    %3 = vector.multi_reduction <add>, %0, %cst [1] : vector<2x128xf32> to vector<2xf32>
    %4 = vector.shape_cast %3 : vector<2xf32> to vector<2x1xf32>
    %cst_5 = arith.constant 1.280000e+02 : f32
    %5 = vector.broadcast %cst_5 : f32 to vector<2x1xf32>
    %6 = arith.divf %4, %5 : vector<2x1xf32>
    %7 = vector.broadcast %6 : vector<2x1xf32> to vector<2x128xf32>
    %8 = arith.subf %0, %7 : vector<2x128xf32>
    %9 = arith.mulf %8, %8 : vector<2x128xf32>
    %cst_6 = arith.constant dense<0.000000e+00> : vector<2xf32>
    %10 = vector.multi_reduction <add>, %9, %cst_6 [1] : vector<2x128xf32> to vector<2xf32>
    %11 = vector.shape_cast %10 : vector<2xf32> to vector<2x1xf32>
    %cst_7 = arith.constant 1.280000e+02 : f32
    %12 = vector.broadcast %cst_7 : f32 to vector<2x1xf32>
    %13 = arith.divf %11, %12 : vector<2x1xf32>
    %14 = vector.broadcast %6 : vector<2x1xf32> to vector<2x128xf32>
    %15 = arith.subf %0, %14 : vector<2x128xf32>
    %cst_8 = arith.constant 9.99999974E-6 : f32
    %16 = vector.broadcast %cst_8 : f32 to vector<2x1xf32>
    %17 = arith.addf %13, %16 : vector<2x1xf32>
    %18 = math.rsqrt %17 : vector<2x1xf32>
    %19 = vector.broadcast %18 : vector<2x1xf32> to vector<2x128xf32>
    %20 = arith.mulf %15, %19 : vector<2x128xf32>
    %21 = vector.broadcast %1 : vector<1x128xf32> to vector<2x128xf32>
    %22 = arith.mulf %20, %21 : vector<2x128xf32>
    %23 = vector.broadcast %2 : vector<1x128xf32> to vector<2x128xf32>
    %24 = arith.addf %22, %23 : vector<2x128xf32>
    %c0_9 = arith.constant 0 : index
    %c0_10 = arith.constant 0 : index
    %25 = vector.load %arg3[%c0_9, %c0_10] : memref<128x128xf32, #tpu.memory_space<vmem>>, vector<128x128xf32>
    %cst_11 = arith.constant dense<0.000000e+00> : vector<2x128xf32>
    %26 = tpu.matmul %24, %25, %cst_11 {dimension_numbers = #tpu.dot_dimension_numbers<[1], [0], [0], [1], [0, 0, 1, 1], [], []>} : vector<2x128xf32>, vector<128x128xf32>, vector<2x128xf32> -> vector<2x128xf32>
    %c0_12 = arith.constant 0 : index
    %c0_13 = arith.constant 0 : index
    %27 = vector.load %arg4[%c0_12, %c0_13] : memref<1x128xf32, #tpu.memory_space<vmem>>, vector<1x128xf32>
    %28 = vector.broadcast %27 : vector<1x128xf32> to vector<2x128xf32>
    %29 = arith.addf %26, %28 : vector<2x128xf32>
    %c0_14 = arith.constant 0 : index
    %c0_15 = arith.constant 0 : index
    %30 = vector.load %arg5[%c0_14, %c0_15] : memref<2x128xf32, #tpu.memory_space<vmem>>, vector<2x128xf32>
    tpu.vector_store %arg5[%c0_14, %c0_15], %29 {strides = array<i32>} : memref<2x128xf32, #tpu.memory_space<vmem>>, vector<2x128xf32>,
    return
  }
}

</mosaic_0001>

<llo_original>
// kernel: vit_forward.4
$region0: #{vit_forward.4}
  #allocation0 [shape = 'u32[]', space=smem, size = 0x4, offset = 0x4, fixed_abs, tag = 'smem constant byte address 0x4 - core index']
  #allocation1 [shape = 'u32[144,128]{1,0:T(1,128)}', space=vmem, size = 0x12000, scoped, tag = 'internal scratch']
  %s0 = inlined_call_operand.vmem [shape: bf16[16,384], index: 0, kind: input, shape index: {}]
  %s1 = inlined_call_operand.vmem [shape: bf16[384,128], index: 1, kind: input, shape index: {}]
  %s2 = inlined_call_operand.vmem [shape: f32[1,128], index: 2, kind: input, shape index: {}]
  %s3 = inlined_call_operand.vmem [shape: f32[16,128], index: 3, kind: output, shape index: {}]
  %s4 = sld [smem:[#allocation0]]
  $region22: #{vit_forward.4} parent=0
    _
  %s6 = ssub.s32 1, %s4
  %s7 = scalar_select 0, %s6, %s4
  // Predicated region
  $region2: #{vit_forward.4} parent=0 // pred_check
    _
  $region3: #{vit_forward.4} parent=0 // pred_check_branch
    %9 = sbr.rel (0) target = $region5
  $region4: #{vit_forward.4} parent=0 // pred_region
    _
  $region5: #{vit_forward.4} parent=0 // pred_fallthru
    _
  // Predicated region
  $region6: #{vit_forward.4} parent=0 // pred_check
    _
  $region7: #{vit_forward.4} parent=0 // pred_check_branch
    %11 = sbr.rel (0) target = $region9
  $region8: #{vit_forward.4} parent=0 // pred_region
    _
  $region9: #{vit_forward.4} parent=0 // pred_fallthru
    _
  // Predicated region
  $region10: #{vit_forward.4} parent=0 // pred_check
    _
  $region11: #{vit_forward.4} parent=0 // pred_check_branch
    %13 = sbr.rel (0) target = $region13
  $region12: #{vit_forward.4} parent=0 // pred_region
    _
  $region13: #{vit_forward.4} parent=0 // pred_fallthru
    _
  %v15 = vld [vmem:[%s0] sm:$0xff]
  %v16 = vld [vmem:[%s0 + $0x8] sm:$0xf]
  %v17 = vld [vmem:[%s0 + $0xc] sm:$0xff]
  %v18 = vld [vmem:[%s0 + $0x14] sm:$0xf]
  %v19 = vld [vmem:[%s1] sm:$0xf]
  %v20 = vld [vmem:[%s1 + $0x4] sm:$0xf]
  %v21 = vld [vmem:[%s1 + $0x8] sm:$0xf]
  %v22 = vld [vmem:[%s1 + $0xc] sm:$0xf]
  %v23 = vld [vmem:[%s1 + $0x10] sm:$0xf]
  %v24 = vld [vmem:[%s1 + $0x14] sm:$0xf]
  %v25 = vld [vmem:[%s1 + $0x18] sm:$0xf]
  %v26 = vld [vmem:[%s1 + $0x1c] sm:$0xf]
  %v27 = vld [vmem:[%s1 + $0x20] sm:$0xf]
  %v28 = vld [vmem:[%s1 + $0x24] sm:$0xf]
  %v29 = vld [vmem:[%s1 + $0x28] sm:$0xf]
  %v30 = vld [vmem:[%s1 + $0x2c] sm:$0xf]
  %v31 = vld [vmem:[%s1 + $0x30] sm:$0xf]
  %v32 = vld [vmem:[%s1 + $0x34] sm:$0xf]
  %v33 = vld [vmem:[%s1 + $0x38] sm:$0xf]
  %v34 = vld [vmem:[%s1 + $0x3c] sm:$0xf]
  %v35 = vld [vmem:[%s1 + $0x40] sm:$0xf]
  %v36 = vld [vmem:[%s1 + $0x44] sm:$0xf]
  %v37 = vld [vmem:[%s1 + $0x48] sm:$0xf]
  %v38 = vld [vmem:[%s1 + $0x4c] sm:$0xf]
  %v39 = vld [vmem:[%s1 + $0x50] sm:$0xf]
  %v40 = vld [vmem:[%s1 + $0x54] sm:$0xf]
  %v41 = vld [vmem:[%s1 + $0x58] sm:$0xf]
  %v42 = vld [vmem:[%s1 + $0x5c] sm:$0xf]
  %v43 = vld [vmem:[%s1 + $0x60] sm:$0xf]
  %v44 = vld [vmem:[%s1 + $0x64] sm:$0xf]
  %v45 = vld [vmem:[%s1 + $0x68] sm:$0xf]
  %v46 = vld [vmem:[%s1 + $0x6c] sm:$0xf]
  %v47 = vld [vmem:[%s1 + $0x70] sm:$0xf]
  %v48 = vld [vmem:[%s1 + $0x74] sm:$0xf]
  %v49 = vld [vmem:[%s1 + $0x78] sm:$0xf]
  %v50 = vld [vmem:[%s1 + $0x7c] sm:$0xf]
  %v51 = vld [vmem:[%s1 + $0x80] sm:$0xf]
  %v52 = vld [vmem:[%s1 + $0x84] sm:$0xf]
  %v53 = vld [vmem:[%s1 + $0x88] sm:$0xf]
  %v54 = vld [vmem:[%s1 + $0x8c] sm:$0xf]
  %v55 = vld [vmem:[%s1 + $0x90] sm:$0xf]
  %v56 = vld [vmem:[%s1 + $0x94] sm:$0xf]
  %v57 = vld [vmem:[%s1 + $0x98] sm:$0xf]
  %v58 = vld [vmem:[%s1 + $0x9c] sm:$0xf]
  %v59 = vld [vmem:[%s1 + $0xa0] sm:$0xf]
  %v60 = vld [vmem:[%s1 + $0xa4] sm:$0xf]
  %v61 = vld [vmem:[%s1 + $0xa8] sm:$0xf]
  %v62 = vld [vmem:[%s1 + $0xac] sm:$0xf]
  %v63 = vld [vmem:[%s1 + $0xb0] sm:$0xf]
  %v64 = vld [vmem:[%s1 + $0xb4] sm:$0xf]
  %v65 = vld [vmem:[%s1 + $0xb8] sm:$0xf]
  %v66 = vld [vmem:[%s1 + $0xbc] sm:$0xf]
  %v67 = vld [vmem:[%s2] sm:$0x1]
  %v69 = vlaneseq
  %v70 = vshrl.u32 %v69, 7
  %v71 = vsub.s32 0, %v70
  %v72 = vrot.slane %v67, %v71
  %v78 = vunpack.c.l.b16 %v15
  %v79 = vunpack.c.h.b16 %v15
  %v80 = vunpack.c.l.b16 %v16
  %v81 = vunpack.c.l.b16 %v17
  %v82 = vunpack.c.h.b16 %v17
  %v83 = vunpack.c.l.b16 %v18
  %v84 = vpack.c.b16 %v81, %v78
  %v85 = vpack.c.b16 %v82, %v79
  %v86 = vpack.c.b16 %v83, %v80
  %v138 = vunpack.c.l.b16 %v19
  %v139 = vunpack.c.l.b16 %v20
  %v140 = vunpack.c.l.b16 %v21
  %v141 = vunpack.c.l.b16 %v22
  %v142 = vunpack.c.l.b16 %v23
  %v143 = vunpack.c.l.b16 %v24
  %v144 = vunpack.c.l.b16 %v25
  %v145 = vunpack.c.l.b16 %v26
  %v146 = vunpack.c.l.b16 %v27
  %v147 = vunpack.c.l.b16 %v28
  %v148 = vunpack.c.l.b16 %v29
  %v149 = vunpack.c.l.b16 %v30
  %v150 = vunpack.c.l.b16 %v31
  %v151 = vunpack.c.l.b16 %v32
  %v152 = vunpack.c.l.b16 %v33
  %v153 = vunpack.c.l.b16 %v34
  %v154 = vunpack.c.l.b16 %v35
  %v155 = vunpack.c.l.b16 %v36
  %v156 = vunpack.c.l.b16 %v37
  %v157 = vunpack.c.l.b16 %v38
  %v158 = vunpack.c.l.b16 %v39
  %v159 = vunpack.c.l.b16 %v40
  %v160 = vunpack.c.l.b16 %v41
  %v161 = vunpack.c.l.b16 %v42
  %v162 = vunpack.c.l.b16 %v43
  %v163 = vunpack.c.l.b16 %v44
  %v164 = vunpack.c.l.b16 %v45
  %v165 = vunpack.c.l.b16 %v46
  %v166 = vunpack.c.l.b16 %v47
  %v167 = vunpack.c.l.b16 %v48
  %v168 = vunpack.c.l.b16 %v49
  %v169 = vunpack.c.l.b16 %v50
  %v170 = vunpack.c.l.b16 %v51
  %v171 = vunpack.c.l.b16 %v52
  %v172 = vunpack.c.l.b16 %v53
  %v173 = vunpack.c.l.b16 %v54
  %v174 = vunpack.c.l.b16 %v55
  %v175 = vunpack.c.l.b16 %v56
  %v176 = vunpack.c.l.b16 %v57
  %v177 = vunpack.c.l.b16 %v58
  %v178 = vunpack.c.l.b16 %v59
  %v179 = vunpack.c.l.b16 %v60
  %v180 = vunpack.c.l.b16 %v61
  %v181 = vunpack.c.l.b16 %v62
  %v182 = vunpack.c.l.b16 %v63
  %v183 = vunpack.c.l.b16 %v64
  %v184 = vunpack.c.l.b16 %v65
  %v185 = vunpack.c.l.b16 %v66
  %v186 = vpack.c.b16 %v139, %v138
  %v187 = vpack.c.b16 %v141, %v140
  %v188 = vpack.c.b16 %v143, %v142
  %v189 = vpack.c.b16 %v145, %v144
  %v190 = vpack.c.b16 %v147, %v146
  %v191 = vpack.c.b16 %v149, %v148
  %v192 = vpack.c.b16 %v151, %v150
  %v193 = vpack.c.b16 %v153, %v152
  %v194 = vpack.c.b16 %v155, %v154
  %v195 = vpack.c.b16 %v157, %v156
  %v196 = vpack.c.b16 %v159, %v158
  %v197 = vpack.c.b16 %v161, %v160
  %v198 = vpack.c.b16 %v163, %v162
  %v199 = vpack.c.b16 %v165, %v164
  %v200 = vpack.c.b16 %v167, %v166
  %v201 = vpack.c.b16 %v169, %v168
  %v202 = vpack.c.b16 %v171, %v170
  %v203 = vpack.c.b16 %v173, %v172
  %v204 = vpack.c.b16 %v175, %v174
  %v205 = vpack.c.b16 %v177, %v176
  %v206 = vpack.c.b16 %v179, %v178
  %v207 = vpack.c.b16 %v181, %v180
  %v208 = vpack.c.b16 %v183, %v182
  %v209 = vpack.c.b16 %v185, %v184
  %234 = vmatprep.subr.bf16.mxu0 0
  %235 = vmatpush1.bf16.msra.mxu0 %v186
  %236 = vmatprep.subr.bf16.mxu0 0
  %237 = vmatpush1.bf16.msra.mxu0 %v187
  %238 = vmatprep.subr.bf16.mxu0 0
  %239 = vmatpush1.bf16.msra.mxu0 %v188
  %240 = vmatprep.subr.bf16.mxu0 0
  %241 = vmatpush1.bf16.msra.mxu0 %v189
  %242 = vmatprep.subr.bf16.mxu0 0
  %243 = vmatpush1.bf16.msra.mxu0 %v190
  %244 = vmatprep.subr.bf16.mxu0 0
  %245 = vmatpush1.bf16.msra.mxu0 %v191
  %246 = vmatprep.subr.bf16.mxu0 0
  %247 = vmatpush1.bf16.msra.mxu0 %v192
  %248 = vmatprep.subr.bf16.mxu0 0
  %249 = vmatpush1.bf16.msra.mxu0 %v193
  %250 = vmatprep.subr.bf16.mxu0 0
  %251 = vmatpush1.bf16.msra.mxu0 %v194
  %252 = vmatprep.subr.bf16.mxu0 0
  %253 = vmatpush1.bf16.msra.mxu0 %v195
  %254 = vmatprep.subr.bf16.mxu0 0
  %255 = vmatpush1.bf16.msra.mxu0 %v196
  %256 = vmatprep.subr.bf16.mxu0 0
  %257 = vmatpush1.bf16.msra.mxu0 %v197
  %258 = vmatprep.subr.bf16.mxu0 0
  %259 = vmatpush1.bf16.msra.mxu0 %v198
  %260 = vmatprep.subr.bf16.mxu0 0
  %261 = vmatpush1.bf16.msra.mxu0 %v199
  %262 = vmatprep.subr.bf16.mxu0 0
  %263 = vmatpush1.bf16.msra.mxu0 %v200
  %264 = vmatprep.subr.bf16.mxu0 0
  %265 = vmatpush1.bf16.msra.mxu0 %v201
  %266 = vmatprep.mubr.bf16.mxu0 %v85
  %267 = vmatmul.mubr.bf16.gmra.mrb[0].mxu0 %v84
  %v268 = vpop.f32.mrb[0].mxu0
  %v269 = vadd.f32 %v72, %v268
  %v270 = vpop.f32.mrb[0].mxu0
  %v271 = vpop.f32.mrb[0].mxu0
  %v272 = vadd.f32 %v72, %v271
  %v273 = vpop.f32.mrb[0].mxu0
  %274 = vdwg.mxu0
  %275 = vmatprep.subr.bf16.mxu0 0
  %276 = vmatpush1.bf16.msra.mxu0 %v202
  %277 = vmatprep.subr.bf16.mxu0 0
  %278 = vmatpush1.bf16.msra.mxu0 %v203
  %279 = vmatprep.subr.bf16.mxu0 0
  %280 = vmatpush1.bf16.msra.mxu0 %v204
  %281 = vmatprep.subr.bf16.mxu0 0
  %282 = vmatpush1.bf16.msra.mxu0 %v205
  %283 = vmatprep.subr.bf16.mxu0 0
  %284 = vmatpush1.bf16.msra.mxu0 %v206
  %285 = vmatprep.subr.bf16.mxu0 0
  %286 = vmatpush1.bf16.msra.mxu0 %v207
  %287 = vmatprep.subr.bf16.mxu0 0
  %288 = vmatpush1.bf16.msra.mxu0 %v208
  %289 = vmatprep.subr.bf16.mxu0 0
  %290 = vmatpush1.bf16.msra.mxu0 %v209
  %291 = vmatprep.subr.bf16.mxu0 0
  %292 = vmatpush1.bf16.msra.mxu0 0
  %293 = vmatprep.subr.bf16.mxu0 0
  %294 = vmatpush1.bf16.msra.mxu0 0
  %295 = vmatprep.subr.bf16.mxu0 0
  %296 = vmatpush1.bf16.msra.mxu0 0
  %297 = vmatprep.subr.bf16.mxu0 0
  %298 = vmatpush1.bf16.msra.mxu0 0
  %299 = vmatprep.subr.bf16.mxu0 0
  %300 = vmatpush1.bf16.msra.mxu0 0
  %301 = vmatprep.subr.bf16.mxu0 0
  %302 = vmatpush1.bf16.msra.mxu0 0
  %303 = vmatprep.subr.bf16.mxu0 0
  %304 = vmatpush1.bf16.msra.mxu0 0
  %305 = vmatprep.subr.bf16.mxu0 0
  %306 = vmatpush1.bf16.msra.mxu0 0
  %307 = vmatprep.mubr.bf16.mxu0 0
  %308 = vmatmul.mubr.bf16.gmra.mrb[0].mxu0 %v86
  %v309 = vpop.f32.mrb[0].mxu0
  %v310 = vadd.f32 %v269, %v309
  %v311 = vpop.f32.mrb[0].mxu0
  %v312 = vpop.f32.mrb[0].mxu0
  %v313 = vadd.f32 %v272, %v312
  %v314 = vpop.f32.mrb[0].mxu0
  %315 = vdwg.mxu0
  %316 = vst [vmem:[%s3] sm:$0xff] %v310
  %317 = vst [vmem:[%s3 + $0x8] sm:$0xff] %v313
  // Predicated region
  $region14: #{vit_forward.4} parent=0 // pred_check
    _
  $region15: #{vit_forward.4} parent=0 // pred_check_branch
    %319 = sbr.rel (0) target = $region17
  $region16: #{vit_forward.4} parent=0 // pred_region
    _
  $region17: #{vit_forward.4} parent=0 // pred_fallthru
    _
  // Predicated region
  $region18: #{vit_forward.4} parent=0 // pred_check
    _
  $region19: #{vit_forward.4} parent=0 // pred_check_branch
    %321 = sbr.rel (0) target = $region21
  $region20: #{vit_forward.4} parent=0 // pred_region
    _
  $region21: #{vit_forward.4} parent=0 // pred_fallthru
    _

// kernel: vit_forward.7
$region0: #{vit_forward.7}
  #allocation0 [shape = 'u32[]', space=smem, size = 0x4, offset = 0x4, fixed_abs, tag = 'smem constant byte address 0x4 - core index']
  #allocation1 [shape = 'u32[144,128]{1,0:T(1,128)}', space=vmem, size = 0x12000, scoped, tag = 'internal scratch']
  %s0 = inlined_call_operand.vmem [shape: f32[2,128], index: 0, kind: input, shape index: {}]
  %s1 = inlined_call_operand.vmem [shape: f32[1,128], index: 1, kind: input, shape index: {}]
  %s2 = inlined_call_operand.vmem [shape: f32[1,128], index: 2, kind: input, shape index: {}]
  %s3 = inlined_call_operand.vmem [shape: f32[128,128], index: 3, kind: input, shape index: {}]
  %s4 = inlined_call_operand.vmem [shape: f32[1,128], index: 4, kind: input, shape index: {}]
  %s5 = inlined_call_operand.hbm [shape: f32[2,128], index: 5, kind: output, shape index: {}]
  %s6 = sld [smem:[#allocation0]]
  $region30: #{vit_forward.7} parent=0
    _
  %s8 = ssub.s32 1, %s6
  %s9 = scalar_select 0, %s8, %s6
  $region1: #{vit_forward.7} parent=0
    #allocation2 [shape = 'u8[1024]{0}', space=vmem, size = 0x400, scoped, tag = 'output window, operand 0, single buffered']
    #allocation3 [shape = 's32[1]{0}', space=sflag, size = 0x4, scoped, tag = 'scoped memory for vit_forward.7']
    %10 = vsyncpa [#allocation3], 0
    // Predicated region
    $region2: #{vit_forward.7} parent=1 // pred_check
      _
    $region3: #{vit_forward.7} parent=1 // pred_check_branch
      %12 = sbr.rel (0) target = $region5
    $region4: #{vit_forward.7} parent=1 // pred_region
      _
    $region5: #{vit_forward.7} parent=1 // pred_fallthru
      _
    // Predicated region
    $region6: #{vit_forward.7} parent=1 // pred_check
      _
    $region7: #{vit_forward.7} parent=1 // pred_check_branch
      %14 = sbr.rel (0) target = $region9
    $region8: #{vit_forward.7} parent=1 // pred_region
      _
    $region9: #{vit_forward.7} parent=1 // pred_fallthru
      _
    // Predicated region
    $region10: #{vit_forward.7} parent=1 // pred_check
      _
    $region11: #{vit_forward.7} parent=1 // pred_check_branch
      %16 = sbr.rel (0) target = $region13
    $region12: #{vit_forward.7} parent=1 // pred_region
      _
    $region13: #{vit_forward.7} parent=1 // pred_fallthru
      _
    // Predicated region
    $region14: #{vit_forward.7} parent=1 // pred_check
      _
    $region15: #{vit_forward.7} parent=1 // pred_check_branch
      %18 = sbr.rel (0) target = $region17
    $region16: #{vit_forward.7} parent=1 // pred_region
      _
    $region17: #{vit_forward.7} parent=1 // pred_fallthru
      _
    // Predicated region
    $region18: #{vit_forward.7} parent=1 // pred_check
      _
    $region19: #{vit_forward.7} parent=1 // pred_check_branch
      %20 = sbr.rel (0) target = $region21
    $region20: #{vit_forward.7} parent=1 // pred_region
      _
    $region21: #{vit_forward.7} parent=1 // pred_fallthru
      _
    %v21 = vld [vmem:[%s0] sm:$0x3]
    %v22 = vld [vmem:[%s1] sm:$0x1]
    %v23 = vld [vmem:[%s2] sm:$0x1]
    %vm24 = vcmask 1041408
    %v25 = vsel %vm24, %v21, 0.0
    %26 = vadd.xlane.f32.xlu0 %v25
    %v27 = vpop.xlane.xlu0 %26
    %v28 = vrcp.pop 128.0
    %v29 = vmul.f32 %v27, %v28
    %v30 = vsub.f32 %v21, %v29
    %v31 = vmul.f32 %v30, %v30
    %v32 = vsel %vm24, %v31, 0.0
    %33 = vadd.xlane.f32.xlu0 %v32
    %v34 = vpop.xlane.xlu0 %33
    %v35 = vmul.f32 %v34, %v28
    %v36 = vadd.f32 %v35, 1e-05
    %v37 = vrsqrt.pop %v36
    %v38 = vmul.f32 %v30, %v37
    %v40 = vlaneseq
    %v41 = vshrl.u32 %v40, 7
    %v42 = vsub.s32 0, %v41
    %v43 = vrot.slane %v22, %v42
    %v45 = vmul.f32 %v38, %v43
    %v47 = vlaneseq
    %v48 = vshrl.u32 %v47, 7
    %v49 = vsub.s32 0, %v48
    %v50 = vrot.slane %v23, %v49
    %v52 = vadd.f32 %v45, %v50
    %v53 = vld [vmem:[%s3] sm:$0xff]
    %v54 = vld [vmem:[%s3 + $0x8] sm:$0xff]
    %v55 = vld [vmem:[%s3 + $0x10] sm:$0xff]
    %v56 = vld [vmem:[%s3 + $0x18] sm:$0xff]
    %v57 = vld [vmem:[%s3 + $0x20] sm:$0xff]
    %v58 = vld [vmem:[%s3 + $0x28] sm:$0xff]
    %v59 = vld [vmem:[%s3 + $0x30] sm:$0xff]
    %v60 = vld [vmem:[%s3 + $0x38] sm:$0xff]
    %v61 = vld [vmem:[%s3 + $0x40] sm:$0xff]
    %v62 = vld [vmem:[%s3 + $0x48] sm:$0xff]
    %v63 = vld [vmem:[%s3 + $0x50] sm:$0xff]
    %v64 = vld [vmem:[%s3 + $0x58] sm:$0xff]
    %v65 = vld [vmem:[%s3 + $0x60] sm:$0xff]
    %v66 = vld [vmem:[%s3 + $0x68] sm:$0xff]
    %v67 = vld [vmem:[%s3 + $0x70] sm:$0xff]
    %v68 = vld [vmem:[%s3 + $0x78] sm:$0xff]
    %v69 = vld [vmem:[%s4] sm:$0x1]
    %v71 = vlaneseq
    %v72 = vshrl.u32 %v71, 7
    %v73 = vsub.s32 0, %v72
    %v74 = vrot.slane %v69, %v73
    %76 = vmatprep.subr.mxu0 0.0
    %77 = vmatpush1.msra.mxu0 %v53
    %78 = vmatprep.subr.mxu0 0.0
    %79 = vmatpush1.msra.mxu0 %v54
    %80 = vmatprep.subr.mxu0 0.0
    %81 = vmatpush1.msra.mxu0 %v55
    %82 = vmatprep.subr.mxu0 0.0
    %83 = vmatpush1.msra.mxu0 %v56
    %84 = vmatprep.subr.mxu0 0.0
    %85 = vmatpush1.msra.mxu0 %v57
    %86 = vmatprep.subr.mxu0 0.0
    %87 = vmatpush1.msra.mxu0 %v58
    %88 = vmatprep.subr.mxu0 0.0
    %89 = vmatpush1.msra.mxu0 %v59
    %90 = vmatprep.subr.mxu0 0.0
    %91 = vmatpush1.msra.mxu0 %v60
    %92 = vmatprep.subr.mxu0 0.0
    %93 = vmatpush1.msra.mxu0 %v61
    %94 = vmatprep.subr.mxu0 0.0
    %95 = vmatpush1.msra.mxu0 %v62
    %96 = vmatprep.subr.mxu0 0.0
    %97 = vmatpush1.msra.mxu0 %v63
    %98 = vmatprep.subr.mxu0 0.0
    %99 = vmatpush1.msra.mxu0 %v64
    %100 = vmatprep.subr.mxu0 0.0
    %101 = vmatpush1.msra.mxu0 %v65
    %102 = vmatprep.subr.mxu0 0.0
    %103 = vmatpush1.msra.mxu0 %v66
    %104 = vmatprep.subr.mxu0 0.0
    %105 = vmatpush1.msra.mxu0 %v67
    %106 = vmatprep.subr.mxu0 0.0
    %107 = vmatpush1.msra.mxu0 %v68
    %108 = vmatprep.subr.mxu0 0.0
    %109 = vmatpush1.msra.mxu0 0.0
    %110 = vmatprep.subr.mxu0 0.0
    %111 = vmatpush1.msra.mxu0 0.0
    %112 = vmatprep.subr.mxu0 0.0
    %113 = vmatpush1.msra.mxu0 0.0
    %114 = vmatprep.subr.mxu0 0.0
    %115 = vmatpush1.msra.mxu0 0.0
    %116 = vmatprep.subr.mxu0 0.0
    %117 = vmatpush1.msra.mxu0 0.0
    %118 = vmatprep.subr.mxu0 0.0
    %119 = vmatpush1.msra.mxu0 0.0
    %120 = vmatprep.subr.mxu0 0.0
    %121 = vmatpush1.msra.mxu0 0.0
    %122 = vmatprep.subr.mxu0 0.0
    %123 = vmatpush1.msra.mxu0 0.0
    %124 = vmatprep.subr.mxu0 0.0
    %125 = vmatpush1.msra.mxu0 0.0
    %126 = vmatprep.subr.mxu0 0.0
    %127 = vmatpush1.msra.mxu0 0.0
    %128 = vmatprep.subr.mxu0 0.0
    %129 = vmatpush1.msra.mxu0 0.0
    %130 = vmatprep.subr.mxu0 0.0
    %131 = vmatpush1.msra.mxu0 0.0
    %132 = vmatprep.subr.mxu0 0.0
    %133 = vmatpush1.msra.mxu0 0.0
    %134 = vmatprep.subr.mxu0 0.0
    %135 = vmatpush1.msra.mxu0 0.0
    %136 = vmatprep.subr.mxu0 0.0
    %137 = vmatpush1.msra.mxu0 0.0
    %138 = vmatprep.subr.mxu0 0.0
    %139 = vmatpush1.msra.mxu0 0.0
    %140 = vmatprep.mubr.f32.mxu0 0.0
    %141 = vmatmul.mubr.f32.gmra.mrb[0].mxu0 %v52
    %v142 = vpop.f32.mrb[0].mxu0
    %v143 = vadd.f32 %v74, %v142
    %v144 = vpop.f32.mrb[0].mxu0
    %145 = vdwg.mxu0
    %146 = vst [vmem:[#allocation2] sm:$0x3] %v143
    // Predicated region
    $region22: #{vit_forward.7} parent=1 // pred_check
      _
    $region23: #{vit_forward.7} parent=1 // pred_check_branch
      %148 = sbr.rel (0) target = $region25
    $region24: #{vit_forward.7} parent=1 // pred_region
      %s150 = ssub.s32 32, 32
      %151 = vsyncadd [#allocation3], %s150
      %s153 = sshll.u32 [#allocation2], 4
      %s154 = int_to_ptr.vmem [resolvable:$true] %s153
      %156 = dma.vmem_to_hbm [thread:$0]  %s154, 32, %s5, [#allocation3]
    $region25: #{vit_forward.7} parent=1 // pred_fallthru
      _
    // Predicated region
    $region26: #{vit_forward.7} parent=1 // pred_check
      _
    $region27: #{vit_forward.7} parent=1 // pred_check_branch
      %158 = sbr.rel (0) target = $region29
    $region28: #{vit_forward.7} parent=1 // pred_region
      %159 = dma.done [#allocation3], 32
    $region29: #{vit_forward.7} parent=1 // pred_fallthru
      _
    %160 = vsyncpa [#allocation3], 1

// kernel: vit_forward.5
$region0: #{vit_forward.5}
  #allocation0 [shape = 'u32[]', space=smem, size = 0x4, offset = 0x4, fixed_abs, tag = 'smem constant byte address 0x4 - core index']
  #allocation1 [shape = 'u32[144,128]{1,0:T(1,128)}', space=vmem, size = 0x12000, scoped, tag = 'internal scratch']
  %s0 = inlined_call_operand.vmem [shape: f32[18,128], index: 0, kind: input, shape index: {}]
  %s1 = inlined_call_operand.vmem [shape: f32[1,128], index: 1, kind: input, shape index: {}]
  %s2 = inlined_call_operand.vmem [shape: f32[1,128], index: 2, kind: input, shape index: {}]
  %s3 = inlined_call_operand.vmem [shape: bf16[128,384], index: 3, kind: input, shape index: {}]
  %s4 = inlined_call_operand.vmem [shape: bf16[128,128], index: 4, kind: input, shape index: {}]
  %s5 = inlined_call_operand.vmem [shape: f32[1,128], index: 5, kind: input, shape index: {}]
  %s6 = inlined_call_operand.vmem [shape: f32[1,128], index: 6, kind: input, shape index: {}]
  %s7 = inlined_call_operand.vmem [shape: f32[1,128], index: 7, kind: input, shape index: {}]
  %s8 = inlined_call_operand.vmem [shape: bf16[128,256], index: 8, kind: input, shape index: {}]
  %s9 = inlined_call_operand.vmem [shape: f32[1,256], index: 9, kind: input, shape index: {}]
  %s10 = inlined_call_operand.vmem [shape: bf16[256,128], index: 10, kind: input, shape index: {}]
  %s11 = inlined_call_operand.vmem [shape: f32[1,128], index: 11, kind: input, shape index: {}]
  %s12 = inlined_call_operand.vmem [shape: f32[18,128], index: 12, kind: output, shape index: {}]
  %s13 = sld [smem:[#allocation0]]
  $region58: #{vit_forward.5} parent=0
    _
  %s15 = ssub.s32 1, %s13
  %s16 = scalar_select 0, %s15, %s13
  // Predicated region
  $region2: #{vit_forward.5} parent=0 // pred_check
    _
  $region3: #{vit_forward.5} parent=0 // pred_check_branch
    %18 = sbr.rel (0) target = $region5
  $region4: #{vit_forward.5} parent=0 // pred_region
    _
  $region5: #{vit_forward.5} parent=0 // pred_fallthru
    _
  // Predicated region
  $region6: #{vit_forward.5} parent=0 // pred_check
    _
  $region7: #{vit_forward.5} parent=0 // pred_check_branch
    %20 = sbr.rel (0) target = $region9
  $region8: #{vit_forward.5} parent=0 // pred_region
    _
  $region9: #{vit_forward.5} parent=0 // pred_fallthru
    _
  // Predicated region
  $region10: #{vit_forward.5} parent=0 // pred_check
    _
  $region11: #{vit_forward.5} parent=0 // pred_check_branch
    %22 = sbr.rel (0) target = $region13
  $region12: #{vit_forward.5} parent=0 // pred_region
    _
  $region13: #{vit_forward.5} parent=0 // pred_fallthru
    _
  // Predicated region
  $region14: #{vit_forward.5} parent=0 // pred_check
    _
  $region15: #{vit_forward.5} parent=0 // pred_check_branch
    %24 = sbr.rel (0) target = $region17
  $region16: #{vit_forward.5} parent=0 // pred_region
    _
  $region17: #{vit_forward.5} parent=0 // pred_fallthru
    _
  // Predicated region
  $region18: #{vit_forward.5} parent=0 // pred_check
    _
  $region19: #{vit_forward.5} parent=0 // pred_check_branch
    %26 = sbr.rel (0) target = $region21
  $region20: #{vit_forward.5} parent=0 // pred_region
    _
  $region21: #{vit_forward.5} parent=0 // pred_fallthru
    _
  // Predicated region
  $region22: #{vit_forward.5} parent=0 // pred_check
    _
  $region23: #{vit_forward.5} parent=0 // pred_check_branch
    %28 = sbr.rel (0) target = $region25
  $region24: #{vit_forward.5} parent=0 // pred_region
    _
  $region25: #{vit_forward.5} parent=0 // pred_fallthru
    _
  // Predicated region
  $region26: #{vit_forward.5} parent=0 // pred_check
    _
  $region27: #{vit_forward.5} parent=0 // pred_check_branch
    %30 = sbr.rel (0) target = $region29
  $region28: #{vit_forward.5} parent=0 // pred_region
    _
  $region29: #{vit_forward.5} parent=0 // pred_fallthru
    _
  // Predicated region
  $region30: #{vit_forward.5} parent=0 // pred_check
    _
  $region31: #{vit_forward.5} parent=0 // pred_check_branch
    %32 = sbr.rel (0) target = $region33
  $region32: #{vit_forward.5} parent=0 // pred_region
    _
  $region33: #{vit_forward.5} parent=0 // pred_fallthru
    _
  // Predicated region
  $region34: #{vit_forward.5} parent=0 // pred_check
    _
  $region35: #{vit_forward.5} parent=0 // pred_check_branch
    %34 = sbr.rel (0) target = $region37
  $region36: #{vit_forward.5} parent=0 // pred_region
    _
  $region37: #{vit_forward.5} parent=0 // pred_fallthru
    _
  // Predicated region
  $region38: #{vit_forward.5} parent=0 // pred_check
    _
  $region39: #{vit_forward.5} parent=0 // pred_check_branch
    %36 = sbr.rel (0) target = $region41
  $region40: #{vit_forward.5} parent=0 // pred_region
    _
  $region41: #{vit_forward.5} parent=0 // pred_fallthru
    _
  // Predicated region
  $region42: #{vit_forward.5} parent=0 // pred_check
    _
  $region43: #{vit_forward.5} parent=0 // pred_check_branch
    %38 = sbr.rel (0) target = $region45
  $region44: #{vit_forward.5} parent=0 // pred_region
    _
  $region45: #{vit_forward.5} parent=0 // pred_fallthru
    _
  // Predicated region
  $region46: #{vit_forward.5} parent=0 // pred_check
    _
  $region47: #{vit_forward.5} parent=0 // pred_check_branch
    %40 = sbr.rel (0) target = $region49
  $region48: #{vit_forward.5} parent=0 // pred_region
    _
  $region49: #{vit_forward.5} parent=0 // pred_fallthru
    _
  %v42 = vld [vmem:[%s0] sm:$0xff]
  %v43 = vld [vmem:[%s0 + $0x8] sm:$0xff]
  %v44 = vld [vmem:[%s0 + $0x10] sm:$0x3]
  %v45 = vld [vmem:[%s1] sm:$0x1]
  %v46 = vld [vmem:[%s2] sm:$0x1]
  %47 = vadd.xlane.f32.xlu0 %v42
  %v48 = vpop.xlane.xlu0 %47
  %49 = vadd.xlane.f32.xlu0 %v43
  %v50 = vpop.xlane.xlu0 %49
  %vm51 = vcmask 1041408
  %v52 = vsel %vm51, %v44, 0.0
  %53 = vadd.xlane.f32.xlu0 %v52
  %v54 = vpop.xlane.xlu0 %53
  %v55 = vrcp.pop 128.0
  %v56 = vmul.f32 %v48, %v55
  %v57 = vmul.f32 %v50, %v55
  %v58 = vmul.f32 %v54, %v55
  %v59 = vsub.f32 %v42, %v56
  %v60 = vsub.f32 %v43, %v57
  %v61 = vsub.f32 %v44, %v58
  %v62 = vmul.f32 %v59, %v59
  %v63 = vmul.f32 %v60, %v60
  %v64 = vmul.f32 %v61, %v61
  %65 = vadd.xlane.f32.xlu0 %v62
  %v66 = vpop.xlane.xlu0 %65
  %67 = vadd.xlane.f32.xlu0 %v63
  %v68 = vpop.xlane.xlu0 %67
  %v69 = vsel %vm51, %v64, 0.0
  %70 = vadd.xlane.f32.xlu0 %v69
  %v71 = vpop.xlane.xlu0 %70
  %v72 = vmul.f32 %v66, %v55
  %v73 = vmul.f32 %v68, %v55
  %v74 = vmul.f32 %v71, %v55
  %v75 = vadd.f32 %v72, 1e-05
  %v76 = vadd.f32 %v73, 1e-05
  %v77 = vadd.f32 %v74, 1e-05
  %v78 = vrsqrt.pop %v75
  %v79 = vrsqrt.pop %v76
  %v80 = vrsqrt.pop %v77
  %v81 = vmul.f32 %v59, %v78
  %v82 = vmul.f32 %v60, %v79
  %v83 = vmul.f32 %v61, %v80
  %v85 = vlaneseq
  %v86 = vshrl.u32 %v85, 7
  %v87 = vsub.s32 0, %v86
  %v88 = vrot.slane %v45, %v87
  %v90 = vmul.f32 %v81, %v88
  %v91 = vmul.f32 %v82, %v88
  %v92 = vmul.f32 %v83, %v88
  %v94 = vlaneseq
  %v95 = vshrl.u32 %v94, 7
  %v96 = vsub.s32 0, %v95
  %v97 = vrot.slane %v46, %v96
  %v99 = vadd.f32 %v90, %v97
  %v100 = vadd.f32 %v91, %v97
  %v101 = vadd.f32 %v92, %v97
  %v102 = vpack.c.bf16 %v100, %v99
  %v103 = vpack.c.bf16 %v101, %v101
  %v104 = vld [vmem:[%s3] sm:$0xff]
  %v105 = vld [vmem:[%s3 + $0x8] sm:$0xf]
  %v106 = vld [vmem:[%s3 + $0xc] sm:$0xff]
  %v107 = vld [vmem:[%s3 + $0x14] sm:$0xf]
  %v108 = vld [vmem:[%s3 + $0x18] sm:$0xff]
  %v109 = vld [vmem:[%s3 + $0x20] sm:$0xf]
  %v110 = vld [vmem:[%s3 + $0x24] sm:$0xff]
  %v111 = vld [vmem:[%s3 + $0x2c] sm:$0xf]
  %v112 = vld [vmem:[%s3 + $0x30] sm:$0xff]
  %v113 = vld [vmem:[%s3 + $0x38] sm:$0xf]
  %v114 = vld [vmem:[%s3 + $0x3c] sm:$0xff]
  %v115 = vld [vmem:[%s3 + $0x44] sm:$0xf]
  %v116 = vld [vmem:[%s3 + $0x48] sm:$0xff]
  %v117 = vld [vmem:[%s3 + $0x50] sm:$0xf]
  %v118 = vld [vmem:[%s3 + $0x54] sm:$0xff]
  %v119 = vld [vmem:[%s3 + $0x5c] sm:$0xf]
  %v120 = vld [vmem:[%s3 + $0x60] sm:$0xff]
  %v121 = vld [vmem:[%s3 + $0x68] sm:$0xf]
  %v122 = vld [vmem:[%s3 + $0x6c] sm:$0xff]
  %v123 = vld [vmem:[%s3 + $0x74] sm:$0xf]
  %v124 = vld [vmem:[%s3 + $0x78] sm:$0xff]
  %v125 = vld [vmem:[%s3 + $0x80] sm:$0xf]
  %v126 = vld [vmem:[%s3 + $0x84] sm:$0xff]
  %v127 = vld [vmem:[%s3 + $0x8c] sm:$0xf]
  %v128 = vld [vmem:[%s3 + $0x90] sm:$0xff]
  %v129 = vld [vmem:[%s3 + $0x98] sm:$0xf]
  %v130 = vld [vmem:[%s3 + $0x9c] sm:$0xff]
  %v131 = vld [vmem:[%s3 + $0xa4] sm:$0xf]
  %v132 = vld [vmem:[%s3 + $0xa8] sm:$0xff]
  %v133 = vld [vmem:[%s3 + $0xb0] sm:$0xf]
  %v134 = vld [vmem:[%s3 + $0xb4] sm:$0xff]
  %v135 = vld [vmem:[%s3 + $0xbc] sm:$0xf]
  %v168 = vunpack.c.l.b16 %v104
  %v169 = vunpack.c.h.b16 %v104
  %v170 = vunpack.c.l.b16 %v105
  %v171 = vunpack.c.l.b16 %v106
  %v172 = vunpack.c.h.b16 %v106
  %v173 = vunpack.c.l.b16 %v107
  %v174 = vunpack.c.l.b16 %v108
  %v175 = vunpack.c.h.b16 %v108
  %v176 = vunpack.c.l.b16 %v109
  %v177 = vunpack.c.l.b16 %v110
  %v178 = vunpack.c.h.b16 %v110
  %v179 = vunpack.c.l.b16 %v111
  %v180 = vunpack.c.l.b16 %v112
  %v181 = vunpack.c.h.b16 %v112
  %v182 = vunpack.c.l.b16 %v113
  %v183 = vunpack.c.l.b16 %v114
  %v184 = vunpack.c.h.b16 %v114
  %v185 = vunpack.c.l.b16 %v115
  %v186 = vunpack.c.l.b16 %v116
  %v187 = vunpack.c.h.b16 %v116
  %v188 = vunpack.c.l.b16 %v117
  %v189 = vunpack.c.l.b16 %v118
  %v190 = vunpack.c.h.b16 %v118
  %v191 = vunpack.c.l.b16 %v119
  %v192 = vunpack.c.l.b16 %v120
  %v193 = vunpack.c.h.b16 %v120
  %v194 = vunpack.c.l.b16 %v121
  %v195 = vunpack.c.l.b16 %v122
  %v196 = vunpack.c.h.b16 %v122
  %v197 = vunpack.c.l.b16 %v123
  %v198 = vunpack.c.l.b16 %v124
  %v199 = vunpack.c.h.b16 %v124
  %v200 = vunpack.c.l.b16 %v125
  %v201 = vunpack.c.l.b16 %v126
  %v202 = vunpack.c.h.b16 %v126
  %v203 = vunpack.c.l.b16 %v127
  %v204 = vunpack.c.l.b16 %v128
  %v205 = vunpack.c.h.b16 %v128
  %v206 = vunpack.c.l.b16 %v129
  %v207 = vunpack.c.l.b16 %v130
  %v208 = vunpack.c.h.b16 %v130
  %v209 = vunpack.c.l.b16 %v131
  %v210 = vunpack.c.l.b16 %v132
  %v211 = vunpack.c.h.b16 %v132
  %v212 = vunpack.c.l.b16 %v133
  %v213 = vunpack.c.l.b16 %v134
  %v214 = vunpack.c.h.b16 %v134
  %v215 = vunpack.c.l.b16 %v135
  %v216 = vpack.c.b16 %v171, %v168
  %v217 = vpack.c.b16 %v172, %v169
  %v218 = vpack.c.b16 %v173, %v170
  %v219 = vpack.c.b16 %v177, %v174
  %v220 = vpack.c.b16 %v178, %v175
  %v221 = vpack.c.b16 %v179, %v176
  %v222 = vpack.c.b16 %v183, %v180
  %v223 = vpack.c.b16 %v184, %v181
  %v224 = vpack.c.b16 %v185, %v182
  %v225 = vpack.c.b16 %v189, %v186
  %v226 = vpack.c.b16 %v190, %v187
  %v227 = vpack.c.b16 %v191, %v188
  %v228 = vpack.c.b16 %v195, %v192
  %v229 = vpack.c.b16 %v196, %v193
  %v230 = vpack.c.b16 %v197, %v194
  %v231 = vpack.c.b16 %v201, %v198
  %v232 = vpack.c.b16 %v202, %v199
  %v233 = vpack.c.b16 %v203, %v200
  %v234 = vpack.c.b16 %v207, %v204
  %v235 = vpack.c.b16 %v208, %v205
  %v236 = vpack.c.b16 %v209, %v206
  %v237 = vpack.c.b16 %v213, %v210
  %v238 = vpack.c.b16 %v214, %v211
  %v239 = vpack.c.b16 %v215, %v212
  %264 = vmatprep.subr.bf16.mxu0 %v217
  %265 = vmatpush1.bf16.msra.mxu0 %v216
  %266 = vmatprep.subr.bf16.mxu0 %v220
  %267 = vmatpush1.bf16.msra.mxu0 %v219
  %268 = vmatprep.subr.bf16.mxu0 %v223
  %269 = vmatpush1.bf16.msra.mxu0 %v222
  %270 = vmatprep.subr.bf16.mxu0 %v226
  %271 = vmatpush1.bf16.msra.mxu0 %v225
  %272 = vmatprep.subr.bf16.mxu0 %v229
  %273 = vmatpush1.bf16.msra.mxu0 %v228
  %274 = vmatprep.subr.bf16.mxu0 %v232
  %275 = vmatpush1.bf16.msra.mxu0 %v231
  %276 = vmatprep.subr.bf16.mxu0 %v235
  %277 = vmatpush1.bf16.msra.mxu0 %v234
  %278 = vmatprep.subr.bf16.mxu0 %v238
  %279 = vmatpush1.bf16.msra.mxu0 %v237
  %280 = vmatprep.subr.bf16.mxu0 0
  %281 = vmatpush1.bf16.msra.mxu0 0
  %282 = vmatprep.subr.bf16.mxu0 0
  %283 = vmatpush1.bf16.msra.mxu0 0
  %284 = vmatprep.subr.bf16.mxu0 0
  %285 = vmatpush1.bf16.msra.mxu0 0
  %286 = vmatprep.subr.bf16.mxu0 0
  %287 = vmatpush1.bf16.msra.mxu0 0
  %288 = vmatprep.subr.bf16.mxu0 0
  %289 = vmatpush1.bf16.msra.mxu0 0
  %290 = vmatprep.subr.bf16.mxu0 0
  %291 = vmatpush1.bf16.msra.mxu0 0
  %292 = vmatprep.subr.bf16.mxu0 0
  %293 = vmatpush1.bf16.msra.mxu0 0
  %294 = vmatprep.subr.bf16.mxu0 0
  %295 = vmatpush1.bf16.msra.mxu0 0
  %296 = vmatprep.mubr.bf16.mxu0 0
  %297 = vmatmul.mubr.bf16.gmra.mrb[0].mxu0 %v102
  %v298 = vpop.f32.mrb[0].mxu0
  %v299 = vadd.f32 0.0, %v298
  %v300 = vpop.f32.mrb[0].mxu0
  %v301 = vadd.f32 0.0, %v300
  %v302 = vpop.f32.mrb[0].mxu0
  %v303 = vadd.f32 0.0, %v302
  %v304 = vpop.f32.mrb[0].mxu0
  %v305 = vadd.f32 0.0, %v304
  %306 = vmatprep.mubr.bf16.mxu0 0
  %307 = vmatmul.mubr.bf16.gmra.mrb[0].mxu0 %v103
  %v308 = vpop.f32.mrb[0].mxu0
  %v309 = vadd.f32 0.0, %v308
  %v310 = vpop.f32.mrb[0].mxu0
  %v311 = vadd.f32 0.0, %v310
  %v312 = vpop.f32.mrb[0].mxu0
  %v313 = vpop.f32.mrb[0].mxu0
  %314 = vdwg.mxu0
  %315 = vmatprep.subr.bf16.mxu0 0
  %316 = vmatpush1.bf16.msra.mxu0 %v218
  %317 = vmatprep.subr.bf16.mxu0 0
  %318 = vmatpush1.bf16.msra.mxu0 %v221
  %319 = vmatprep.subr.bf16.mxu0 0
  %320 = vmatpush1.bf16.msra.mxu0 %v224
  %321 = vmatprep.subr.bf16.mxu0 0
  %322 = vmatpush1.bf16.msra.mxu0 %v227
  %323 = vmatprep.subr.bf16.mxu0 0
  %324 = vmatpush1.bf16.msra.mxu0 %v230
  %325 = vmatprep.subr.bf16.mxu0 0
  %326 = vmatpush1.bf16.msra.mxu0 %v233
  %327 = vmatprep.subr.bf16.mxu0 0
  %328 = vmatpush1.bf16.msra.mxu0 %v236
  %329 = vmatprep.subr.bf16.mxu0 0
  %330 = vmatpush1.bf16.msra.mxu0 %v239
  %331 = vmatprep.subr.bf16.mxu0 0
  %332 = vmatpush1.bf16.msra.mxu0 0
  %333 = vmatprep.subr.bf16.mxu0 0
  %334 = vmatpush1.bf16.msra.mxu0 0
  %335 = vmatprep.subr.bf16.mxu0 0
  %336 = vmatpush1.bf16.msra.mxu0 0
  %337 = vmatprep.subr.bf16.mxu0 0
  %338 = vmatpush1.bf16.msra.mxu0 0
  %339 = vmatprep.subr.bf16.mxu0 0
  %340 = vmatpush1.bf16.msra.mxu0 0
  %341 = vmatprep.subr.bf16.mxu0 0
  %342 = vmatpush1.bf16.msra.mxu0 0
  %343 = vmatprep.subr.bf16.mxu0 0
  %344 = vmatpush1.bf16.msra.mxu0 0
  %345 = vmatprep.subr.bf16.mxu0 0
  %346 = vmatpush1.bf16.msra.mxu0 0
  %347 = vmatprep.mubr.bf16.mxu0 0
  %348 = vmatmul.mubr.bf16.gmra.mrb[0].mxu0 %v102
  %v349 = vpop.f32.mrb[0].mxu0
  %v350 = vadd.f32 0.0, %v349
  %v351 = vpop.f32.mrb[0].mxu0
  %v352 = vpop.f32.mrb[0].mxu0
  %v353 = vadd.f32 0.0, %v352
  %v354 = vpop.f32.mrb[0].mxu0
  %355 = vmatprep.mubr.bf16.mxu0 0
  %356 = vmatmul.mubr.bf16.gmra.mrb[0].mxu0 %v103
  %v357 = vpop.f32.mrb[0].mxu0
  %v358 = vadd.f32 0.0, %v357
  %v359 = vpop.f32.mrb[0].mxu0
  %v360 = vpop.f32.mrb[0].mxu0
  %v361 = vpop.f32.mrb[0].mxu0
  %362 = vdwg.mxu0
  %v363 = vmul.f32 %v299, 0.125
  %v364 = vmul.f32 %v303, 0.125
  %v365 = vpack.c.bf16 %v364, %v363
  %367 = vrot.lane.b32.xlu0 %v365, 64
  %v368 = vpop.permute.xlu0 %367
  %v369 = vpack.c.bf16 %v305, %v301
  %371 = vrot.lane.b32.xlu0 %v369, 64
  %v372 = vpop.permute.xlu0 %371
  %v374 = vpack.c.bf16 %v353, %v350
  %376 = vrot.lane.b32.xlu0 %v374, 64
  %v377 = vpop.permute.xlu0 %376
  %379 = vxpose.xlu0.c.b16.start [1/8] %v369, 128
  %380 = vxpose.xlu0.c.b16.cont [2/8] 0, 128
  %381 = vxpose.xlu0.c.b16.cont [3/8] 0, 128
  %382 = vxpose.xlu0.c.b16.cont [4/8] 0, 128
  %383 = vxpose.xlu0.c.b16.cont [5/8] 0, 128
  %384 = vxpose.xlu0.c.b16.cont [6/8] 0, 128
  %385 = vxpose.xlu0.c.b16.cont [7/8] 0, 128
  %386 = vxpose.xlu0.c.b16.end [8/8] 0, 128
  %v387 = vpop.trf.xlu0
  %v388 = vpop.trf.xlu0
  %v389 = vpop.trf.xlu0
  %v390 = vpop.trf.xlu0
  %v391 = vpop.trf.xlu0
  %v392 = vpop.trf.xlu0
  %v393 = vpop.trf.xlu0
  %v394 = vpop.trf.xlu0
  %395 = vxpose.xlu0.c.b16.start [1/8] %v372, 128
  %396 = vxpose.xlu0.c.b16.cont [2/8] 0, 128
  %397 = vxpose.xlu0.c.b16.cont [3/8] 0, 128
  %398 = vxpose.xlu0.c.b16.cont [4/8] 0, 128
  %399 = vxpose.xlu0.c.b16.cont [5/8] 0, 128
  %400 = vxpose.xlu0.c.b16.cont [6/8] 0, 128
  %401 = vxpose.xlu0.c.b16.cont [7/8] 0, 128
  %402 = vxpose.xlu0.c.b16.end [8/8] 0, 128
  %v403 = vpop.trf.xlu0
  %v404 = vpop.trf.xlu0
  %v405 = vpop.trf.xlu0
  %v406 = vpop.trf.xlu0
  %v407 = vpop.trf.xlu0
  %v408 = vpop.trf.xlu0
  %v409 = vpop.trf.xlu0
  %v410 = vpop.trf.xlu0
  %vm411 = vcmask 523264
  %v413 = vsel %vm411, %v365, 0
  %415 = vmatprep.subr.bf16.mxu0 0
  %416 = vmatpush1.bf16.msra.mxu0 %v387
  %417 = vmatprep.subr.bf16.mxu0 0
  %418 = vmatpush1.bf16.msra.mxu0 %v388
  %419 = vmatprep.subr.bf16.mxu0 0
  %420 = vmatpush1.bf16.msra.mxu0 %v389
  %421 = vmatprep.subr.bf16.mxu0 0
  %422 = vmatpush1.bf16.msra.mxu0 %v390
  %423 = vmatprep.subr.bf16.mxu0 0
  %424 = vmatpush1.bf16.msra.mxu0 0
  %425 = vmatprep.subr.bf16.mxu0 0
  %426 = vmatpush1.bf16.msra.mxu0 0
  %427 = vmatprep.subr.bf16.mxu0 0
  %428 = vmatpush1.bf16.msra.mxu0 0
  %429 = vmatprep.subr.bf16.mxu0 0
  %430 = vmatpush1.bf16.msra.mxu0 0
  %431 = vmatprep.subr.bf16.mxu0 0
  %432 = vmatpush1.bf16.msra.mxu0 0
  %433 = vmatprep.subr.bf16.mxu0 0
  %434 = vmatpush1.bf16.msra.mxu0 0
  %435 = vmatprep.subr.bf16.mxu0 0
  %436 = vmatpush1.bf16.msra.mxu0 0
  %437 = vmatprep.subr.bf16.mxu0 0
  %438 = vmatpush1.bf16.msra.mxu0 0
  %439 = vmatprep.subr.bf16.mxu0 0
  %440 = vmatpush1.bf16.msra.mxu0 0
  %441 = vmatprep.subr.bf16.mxu0 0
  %442 = vmatpush1.bf16.msra.mxu0 0
  %443 = vmatprep.subr.bf16.mxu0 0
  %444 = vmatpush1.bf16.msra.mxu0 0
  %445 = vmatprep.subr.bf16.mxu0 0
  %446 = vmatpush1.bf16.msra.mxu0 0
  %447 = vmatprep.mubr.bf16.mxu0 0
  %448 = vmatmul.mubr.bf16.gmra.mrb[0].mxu0 %v413
  %v449 = vpop.f32.mrb[0].mxu0
  %v450 = vadd.f32 0.0, %v449
  %v451 = vpop.f32.mrb[0].mxu0
  %v452 = vpop.f32.mrb[0].mxu0
  %v453 = vadd.f32 0.0, %v452
  %v454 = vpop.f32.mrb[0].mxu0
  %455 = vdwg.mxu0
  %v457 = vsel %vm411, %v368, 0
  %459 = vmatprep.subr.bf16.mxu0 0
  %460 = vmatpush1.bf16.msra.mxu0 %v403
  %461 = vmatprep.subr.bf16.mxu0 0
  %462 = vmatpush1.bf16.msra.mxu0 %v404
  %463 = vmatprep.subr.bf16.mxu0 0
  %464 = vmatpush1.bf16.msra.mxu0 %v405
  %465 = vmatprep.subr.bf16.mxu0 0
  %466 = vmatpush1.bf16.msra.mxu0 %v406
  %467 = vmatprep.subr.bf16.mxu0 0
  %468 = vmatpush1.bf16.msra.mxu0 0
  %469 = vmatprep.subr.bf16.mxu0 0
  %470 = vmatpush1.bf16.msra.mxu0 0
  %471 = vmatprep.subr.bf16.mxu0 0
  %472 = vmatpush1.bf16.msra.mxu0 0
  %473 = vmatprep.subr.bf16.mxu0 0
  %474 = vmatpush1.bf16.msra.mxu0 0
  %475 = vmatprep.subr.bf16.mxu0 0
  %476 = vmatpush1.bf16.msra.mxu0 0
  %477 = vmatprep.subr.bf16.mxu0 0
  %478 = vmatpush1.bf16.msra.mxu0 0
  %479 = vmatprep.subr.bf16.mxu0 0
  %480 = vmatpush1.bf16.msra.mxu0 0
  %481 = vmatprep.subr.bf16.mxu0 0
  %482 = vmatpush1.bf16.msra.mxu0 0
  %483 = vmatprep.subr.bf16.mxu0 0
  %484 = vmatpush1.bf16.msra.mxu0 0
  %485 = vmatprep.subr.bf16.mxu0 0
  %486 = vmatpush1.bf16.msra.mxu0 0
  %487 = vmatprep.subr.bf16.mxu0 0
  %488 = vmatpush1.bf16.msra.mxu0 0
  %489 = vmatprep.subr.bf16.mxu0 0
  %490 = vmatpush1.bf16.msra.mxu0 0
  %491 = vmatprep.mubr.bf16.mxu0 0
  %492 = vmatmul.mubr.bf16.gmra.mrb[0].mxu0 %v457
  %v493 = vpop.f32.mrb[0].mxu0
  %v494 = vadd.f32 0.0, %v493
  %v495 = vpop.f32.mrb[0].mxu0
  %v496 = vpop.f32.mrb[0].mxu0
  %v497 = vadd.f32 0.0, %v496
  %v498 = vpop.f32.mrb[0].mxu0
  %499 = vdwg.mxu0
  %vm500 = vcmask 72704
  %v501 = vsel %vm500, %v450, -inf
  %502 = vmax.xlane.f32.xlu0 %v501
  %v503 = vpop.xlane.xlu0 %502
  %vm504 = vcmask 65536
  %v505 = vsel %vm504, %v453, -inf
  %506 = vmax.xlane.f32.xlu0 %v505
  %v507 = vpop.xlane.xlu0 %506
  %v508 = vsel %vm500, %v494, -inf
  %509 = vmax.xlane.f32.xlu0 %v508
  %v510 = vpop.xlane.xlu0 %509
  %v511 = vsel %vm504, %v497, -inf
  %512 = vmax.xlane.f32.xlu0 %v511
  %v513 = vpop.xlane.xlu0 %512
  %v514 = vsub.f32 %v450, %v503
  %v515 = vsub.f32 %v453, %v507
  %v516 = vsub.f32 %v494, %v510
  %v517 = vsub.f32 %v497, %v513
  %v518 = vmul.f32 %v514, 1.442695
  %v519 = vpow.pop %v518
  %v520 = vmul.f32 %v515, 1.442695
  %v521 = vpow.pop %v520
  %v522 = vmul.f32 %v516, 1.442695
  %v523 = vpow.pop %v522
  %v524 = vmul.f32 %v517, 1.442695
  %v525 = vpow.pop %v524
  %v526 = vsel %vm500, %v519, 0.0
  %527 = vadd.xlane.f32.xlu0 %v526
  %v528 = vpop.xlane.xlu0 %527
  %v529 = vsel %vm504, %v521, 0.0
  %530 = vadd.xlane.f32.xlu0 %v529
  %v531 = vpop.xlane.xlu0 %530
  %v532 = vsel %vm500, %v523, 0.0
  %533 = vadd.xlane.f32.xlu0 %v532
  %v534 = vpop.xlane.xlu0 %533
  %v535 = vsel %vm504, %v525, 0.0
  %536 = vadd.xlane.f32.xlu0 %v535
  %v537 = vpop.xlane.xlu0 %536
  %v538 = vrcp.pop %v528
  %v539 = vrcp.pop %v531
  %v540 = vrcp.pop %v534
  %v541 = vrcp.pop %v537
  %v542 = vmul.f32 %v519, %v538
  %v543 = vmul.f32 %v521, %v539
  %v544 = vmul.f32 %v523, %v540
  %v545 = vmul.f32 %v525, %v541
  %v546 = vpack.c.bf16 %v543, %v542
  %v547 = vpack.c.bf16 %v545, %v544
  %548 = vxpose.xlu0.c.b16.start [1/8] %v374, 128
  %549 = vxpose.xlu0.c.b16.cont [2/8] 0, 128
  %550 = vxpose.xlu0.c.b16.cont [3/8] 0, 128
  %551 = vxpose.xlu0.c.b16.cont [4/8] 0, 128
  %552 = vxpose.xlu0.c.b16.cont [5/8] 0, 128
  %553 = vxpose.xlu0.c.b16.cont [6/8] 0, 128
  %554 = vxpose.xlu0.c.b16.cont [7/8] 0, 128
  %555 = vxpose.xlu0.c.b16.end [8/8] 0, 128
  %v556 = vpop.trf.xlu0
  %v557 = vpop.trf.xlu0
  %v558 = vpop.trf.xlu0
  %v559 = vpop.trf.xlu0
  %v560 = vpop.trf.xlu0
  %v561 = vpop.trf.xlu0
  %v562 = vpop.trf.xlu0
  %v563 = vpop.trf.xlu0
  %564 = vxpose.xlu0.c.b16.start [1/8] %v377, 128
  %565 = vxpose.xlu0.c.b16.cont [2/8] 0, 128
  %566 = vxpose.xlu0.c.b16.cont [3/8] 0, 128
  %567 = vxpose.xlu0.c.b16.cont [4/8] 0, 128
  %568 = vxpose.xlu0.c.b16.cont [5/8] 0, 128
  %569 = vxpose.xlu0.c.b16.cont [6/8] 0, 128
  %570 = vxpose.xlu0.c.b16.cont [7/8] 0, 128
  %571 = vxpose.xlu0.c.b16.end [8/8] 0, 128
  %v572 = vpop.trf.xlu0
  %v573 = vpop.trf.xlu0
  %v574 = vpop.trf.xlu0
  %v575 = vpop.trf.xlu0
  %v576 = vpop.trf.xlu0
  %v577 = vpop.trf.xlu0
  %v578 = vpop.trf.xlu0
  %v579 = vpop.trf.xlu0
  %v581 = vsel %vm500, %v556, 0
  %v584 = vsel %vm500, %v557, 0
  %v587 = vsel %vm500, %v558, 0
  %v590 = vsel %vm500, %v559, 0
  %v593 = vsel %vm500, %v546, 0
  %595 = vmatprep.subr.bf16.mxu0 0
  %596 = vmatpush1.bf16.xpose.msra.mxu0 %v593
  %597 = vmatprep.subr.bf16.mxu0 0
  %598 = vmatpush1.bf16.xpose.msra.mxu0 0
  %599 = vmatprep.subr.bf16.mxu0 0
  %600 = vmatpush1.bf16.xpose.msra.mxu0 0
  %601 = vmatprep.subr.bf16.mxu0 0
  %602 = vmatpush1.bf16.xpose.msra.mxu0 0
  %603 = vmatprep.subr.bf16.mxu0 0
  %604 = vmatpush1.bf16.xpose.msra.mxu0 0
  %605 = vmatprep.subr.bf16.mxu0 0
  %606 = vmatpush1.bf16.xpose.msra.mxu0 0
  %607 = vmatprep.subr.bf16.mxu0 0
  %608 = vmatpush1.bf16.xpose.msra.mxu0 0
  %609 = vmatprep.subr.bf16.mxu0 0
  %610 = vmatpush1.bf16.xpose.msra.mxu0 0
  %611 = vmatprep.subr.bf16.mxu0 0
  %612 = vmatpush1.bf16.xpose.msra.mxu0 0
  %613 = vmatprep.subr.bf16.mxu0 0
  %614 = vmatpush1.bf16.xpose.msra.mxu0 0
  %615 = vmatprep.subr.bf16.mxu0 0
  %616 = vmatpush1.bf16.xpose.msra.mxu0 0
  %617 = vmatprep.subr.bf16.mxu0 0
  %618 = vmatpush1.bf16.xpose.msra.mxu0 0
  %619 = vmatprep.subr.bf16.mxu0 0
  %620 = vmatpush1.bf16.xpose.msra.mxu0 0
  %621 = vmatprep.subr.bf16.mxu0 0
  %622 = vmatpush1.bf16.xpose.msra.mxu0 0
  %623 = vmatprep.subr.bf16.mxu0 0
  %624 = vmatpush1.bf16.xpose.msra.mxu0 0
  %625 = vmatprep.subr.bf16.mxu0 0
  %626 = vmatpush1.bf16.xpose.msra.mxu0 0
  %627 = vmatprep.mubr.bf16.mxu0 0
  %628 = vmatmul.mubr.bf16.gmra.mrb[0].mxu0 %v581
  %v629 = vpop.f32.mrb[0].mxu0
  %v630 = vadd.f32 0.0, %v629
  %v631 = vpop.f32.mrb[0].mxu0
  %v632 = vpop.f32.mrb[0].mxu0
  %v633 = vadd.f32 0.0, %v632
  %v634 = vpop.f32.mrb[0].mxu0
  %635 = vmatprep.mubr.bf16.mxu0 0
  %636 = vmatmul.mubr.bf16.gmra.mrb[0].mxu0 %v584
  %v637 = vpop.f32.mrb[0].mxu0
  %v638 = vadd.f32 0.0, %v637
  %v639 = vpop.f32.mrb[0].mxu0
  %v640 = vpop.f32.mrb[0].mxu0
  %v641 = vadd.f32 0.0, %v640
  %v642 = vpop.f32.mrb[0].mxu0
  %643 = vmatprep.mubr.bf16.mxu0 0
  %644 = vmatmul.mubr.bf16.gmra.mrb[0].mxu0 %v587
  %v645 = vpop.f32.mrb[0].mxu0
  %v646 = vadd.f32 0.0, %v645
  %v647 = vpop.f32.mrb[0].mxu0
  %v648 = vpop.f32.mrb[0].mxu0
  %v649 = vadd.f32 0.0, %v648
  %v650 = vpop.f32.mrb[0].mxu0
  %651 = vmatprep.mubr.bf16.mxu0 0
  %652 = vmatmul.mubr.bf16.gmra.mrb[0].mxu0 %v590
  %v653 = vpop.f32.mrb[0].mxu0
  %v654 = vadd.f32 0.0, %v653
  %v655 = vpop.f32.mrb[0].mxu0
  %v656 = vpop.f32.mrb[0].mxu0
  %v657 = vadd.f32 0.0, %v656
  %v658 = vpop.f32.mrb[0].mxu0
  %659 = vdwg.mxu0
  %v661 = vsel %vm500, %v572, 0
  %v664 = vsel %vm500, %v573, 0
  %v667 = vsel %vm500, %v574, 0
  %v670 = vsel %vm500, %v575, 0
  %v673 = vsel %vm500, %v547, 0
  %675 = vmatprep.subr.bf16.mxu0 0
  %676 = vmatpush1.bf16.xpose.msra.mxu0 %v673
  %677 = vmatprep.subr.bf16.mxu0 0
  %678 = vmatpush1.bf16.xpose.msra.mxu0 0
  %679 = vmatprep.subr.bf16.mxu0 0
  %680 = vmatpush1.bf16.xpose.msra.mxu0 0
  %681 = vmatprep.subr.bf16.mxu0 0
  %682 = vmatpush1.bf16.xpose.msra.mxu0 0
  %683 = vmatprep.subr.bf16.mxu0 0
  %684 = vmatpush1.bf16.xpose.msra.mxu0 0
  %685 = vmatprep.subr.bf16.mxu0 0
  %686 = vmatpush1.bf16.xpose.msra.mxu0 0
  %687 = vmatprep.subr.bf16.mxu0 0
  %688 = vmatpush1.bf16.xpose.msra.mxu0 0
  %689 = vmatprep.subr.bf16.mxu0 0
  %690 = vmatpush1.bf16.xpose.msra.mxu0 0
  %691 = vmatprep.subr.bf16.mxu0 0
  %692 = vmatpush1.bf16.xpose.msra.mxu0 0
  %693 = vmatprep.subr.bf16.mxu0 0
  %694 = vmatpush1.bf16.xpose.msra.mxu0 0
  %695 = vmatprep.subr.bf16.mxu0 0
  %696 = vmatpush1.bf16.xpose.msra.mxu0 0
  %697 = vmatprep.subr.bf16.mxu0 0
  %698 = vmatpush1.bf16.xpose.msra.mxu0 0
  %699 = vmatprep.subr.bf16.mxu0 0
  %700 = vmatpush1.bf16.xpose.msra.mxu0 0
  %701 = vmatprep.subr.bf16.mxu0 0
  %702 = vmatpush1.bf16.xpose.msra.mxu0 0
  %703 = vmatprep.subr.bf16.mxu0 0
  %704 = vmatpush1.bf16.xpose.msra.mxu0 0
  %705 = vmatprep.subr.bf16.mxu0 0
  %706 = vmatpush1.bf16.xpose.msra.mxu0 0
  %707 = vmatprep.mubr.bf16.mxu0 0
  %708 = vmatmul.mubr.bf16.gmra.mrb[0].mxu0 %v661
  %v709 = vpop.f32.mrb[0].mxu0
  %v710 = vadd.f32 0.0, %v709
  %v711 = vpop.f32.mrb[0].mxu0
  %v712 = vpop.f32.mrb[0].mxu0
  %v713 = vadd.f32 0.0, %v712
  %v714 = vpop.f32.mrb[0].mxu0
  %715 = vmatprep.mubr.bf16.mxu0 0
  %716 = vmatmul.mubr.bf16.gmra.mrb[0].mxu0 %v664
  %v717 = vpop.f32.mrb[0].mxu0
  %v718 = vadd.f32 0.0, %v717
  %v719 = vpop.f32.mrb[0].mxu0
  %v720 = vpop.f32.mrb[0].mxu0
  %v721 = vadd.f32 0.0, %v720
  %v722 = vpop.f32.mrb[0].mxu0
  %723 = vmatprep.mubr.bf16.mxu0 0
  %724 = vmatmul.mubr.bf16.gmra.mrb[0].mxu0 %v667
  %v725 = vpop.f32.mrb[0].mxu0
  %v726 = vadd.f32 0.0, %v725
  %v727 = vpop.f32.mrb[0].mxu0
  %v728 = vpop.f32.mrb[0].mxu0
  %v729 = vadd.f32 0.0, %v728
  %v730 = vpop.f32.mrb[0].mxu0
  %731 = vmatprep.mubr.bf16.mxu0 0
  %732 = vmatmul.mubr.bf16.gmra.mrb[0].mxu0 %v670
  %v733 = vpop.f32.mrb[0].mxu0
  %v734 = vadd.f32 0.0, %v733
  %v735 = vpop.f32.mrb[0].mxu0
  %v736 = vpop.f32.mrb[0].mxu0
  %v737 = vadd.f32 0.0, %v736
  %v738 = vpop.f32.mrb[0].mxu0
  %739 = vdwg.mxu0
  %740 = vxpose.xlu0.b32.start [1/16] %v630, 128
  %741 = vxpose.xlu0.b32.cont [2/16] %v633, 128
  %742 = vxpose.xlu0.b32.cont [3/16] %v638, 128
  %743 = vxpose.xlu0.b32.cont [4/16] %v641, 128
  %744 = vxpose.xlu0.b32.cont [5/16] %v646, 128
  %745 = vxpose.xlu0.b32.cont [6/16] %v649, 128
  %746 = vxpose.xlu0.b32.cont [7/16] %v654, 128
  %747 = vxpose.xlu0.b32.cont [8/16] %v657, 128
  %748 = vxpose.xlu0.b32.cont [9/16] 0.0, 128
  %749 = vxpose.xlu0.b32.cont [10/16] 0.0, 128
  %750 = vxpose.xlu0.b32.cont [11/16] 0.0, 128
  %751 = vxpose.xlu0.b32.cont [12/16] 0.0, 128
  %752 = vxpose.xlu0.b32.cont [13/16] 0.0, 128
  %753 = vxpose.xlu0.b32.cont [14/16] 0.0, 128
  %754 = vxpose.xlu0.b32.cont [15/16] 0.0, 128
  %755 = vxpose.xlu0.b32.end [16/16] 0.0, 128
  %v756 = vpop.trf.xlu0
  %v757 = vpop.trf.xlu0
  %v758 = vpop.trf.xlu0
  %v759 = vpop.trf.xlu0
  %v760 = vpop.trf.xlu0
  %v761 = vpop.trf.xlu0
  %v762 = vpop.trf.xlu0
  %v763 = vpop.trf.xlu0
  %v764 = vpop.trf.xlu0
  %v765 = vpop.trf.xlu0
  %v766 = vpop.trf.xlu0
  %v767 = vpop.trf.xlu0
  %v768 = vpop.trf.xlu0
  %v769 = vpop.trf.xlu0
  %v770 = vpop.trf.xlu0
  %v771 = vpop.trf.xlu0
  %772 = vxpose.xlu0.b32.start [1/16] %v710, 128
  %773 = vxpose.xlu0.b32.cont [2/16] %v713, 128
  %774 = vxpose.xlu0.b32.cont [3/16] %v718, 128
  %775 = vxpose.xlu0.b32.cont [4/16] %v721, 128
  %776 = vxpose.xlu0.b32.cont [5/16] %v726, 128
  %777 = vxpose.xlu0.b32.cont [6/16] %v729, 128
  %778 = vxpose.xlu0.b32.cont [7/16] %v734, 128
  %779 = vxpose.xlu0.b32.cont [8/16] %v737, 128
  %780 = vxpose.xlu0.b32.cont [9/16] 0.0, 128
  %781 = vxpose.xlu0.b32.cont [10/16] 0.0, 128
  %782 = vxpose.xlu0.b32.cont [11/16] 0.0, 128
  %783 = vxpose.xlu0.b32.cont [12/16] 0.0, 128
  %784 = vxpose.xlu0.b32.cont [13/16] 0.0, 128
  %785 = vxpose.xlu0.b32.cont [14/16] 0.0, 128
  %786 = vxpose.xlu0.b32.cont [15/16] 0.0, 128
  %787 = vxpose.xlu0.b32.end [16/16] 0.0, 128
  %v788 = vpop.trf.xlu0
  %v789 = vpop.trf.xlu0
  %v790 = vpop.trf.xlu0
  %v791 = vpop.trf.xlu0
  %v792 = vpop.trf.xlu0
  %v793 = vpop.trf.xlu0
  %v794 = vpop.trf.xlu0
  %v795 = vpop.trf.xlu0
  %v796 = vpop.trf.xlu0
  %v797 = vpop.trf.xlu0
  %v798 = vpop.trf.xlu0
  %v799 = vpop.trf.xlu0
  %v800 = vpop.trf.xlu0
  %v801 = vpop.trf.xlu0
  %v802 = vpop.trf.xlu0
  %v803 = vpop.trf.xlu0
  %v804 = vcombine.high %v756, 0.0
  %v806 = vunpack.c.l.s4 1983009808
  %v807 = vunpack.c.0.s8 %v806
  %v808 = vlaneseq
  %v809 = vshrl.u32 %v808, 7
  %v810 = vsub.s32 %v807, %v809
  %v811 = vrot.slane %v756, %v810
  %v813 = vunpack.c.l.s4 1983009808
  %v814 = vunpack.c.0.s8 %v813
  %v815 = vlaneseq
  %v816 = vshrl.u32 %v815, 7
  %v817 = vsub.s32 %v814, %v816
  %v818 = vrot.slane %v804, %v817
  %v819 = vcombine.high %v788, 0.0
  %v821 = vunpack.c.l.s4 1983009808
  %v822 = vunpack.c.0.s8 %v821
  %v823 = vlaneseq
  %v824 = vshrl.u32 %v823, 7
  %v825 = vsub.s32 %v822, %v824
  %v826 = vrot.slane %v788, %v825
  %v828 = vunpack.c.l.s4 1983009808
  %v829 = vunpack.c.0.s8 %v828
  %v830 = vlaneseq
  %v831 = vshrl.u32 %v830, 7
  %v832 = vsub.s32 %v829, %v831
  %v833 = vrot.slane %v819, %v832
  %v834 = vcombine.low %v811, %v826
  %v835 = vcombine.high %v811, %v826
  %v837 = vunpack.c.l.s4 1934713408
  %v838 = vunpack.c.0.s8 %v837
  %v839 = vlaneseq
  %v840 = vshrl.u32 %v839, 7
  %v841 = vsub.s32 %v838, %v840
  %v842 = vrot.slane %v834, %v841
  %v844 = vunpack.c.l.s4 1934713408
  %v845 = vunpack.c.0.s8 %v844
  %v846 = vlaneseq
  %v847 = vshrl.u32 %v846, 7
  %v848 = vsub.s32 %v845, %v847
  %v849 = vrot.slane %v835, %v848
  %v850 = vcombine.low %v818, %v833
  %v851 = vcombine.high %v818, %v833
  %v853 = vunpack.c.l.s4 1934713408
  %v854 = vunpack.c.0.s8 %v853
  %v855 = vlaneseq
  %v856 = vshrl.u32 %v855, 7
  %v857 = vsub.s32 %v854, %v856
  %v858 = vrot.slane %v850, %v857
  %v860 = vunpack.c.l.s4 1934713408
  %v861 = vunpack.c.0.s8 %v860
  %v862 = vlaneseq
  %v863 = vshrl.u32 %v862, 7
  %v864 = vsub.s32 %v861, %v863
  %v865 = vrot.slane %v851, %v864
  %v866 = vcombine.high %v842, 0.0
  %v867 = vcombine.high %v849, 0.0
  %v868 = vcombine.high %v858, 0.0
  %v869 = vcombine.high %v865, 0.0
  %v870 = vcombine.low %v757, %v789
  %v871 = vcombine.low %v842, %v849
  %v873 = vunpack.c.l.s4 1983009808
  %v874 = vunpack.c.0.s8 %v873
  %v875 = vlaneseq
  %v876 = vshrl.u32 %v875, 7
  %v877 = vsub.s32 %v874, %v876
  %v878 = vrot.slane %v871, %v877
  %v879 = vcombine.low %v866, %v867
  %v881 = vunpack.c.l.s4 1983009808
  %v882 = vunpack.c.0.s8 %v881
  %v883 = vlaneseq
  %v884 = vshrl.u32 %v883, 7
  %v885 = vsub.s32 %v882, %v884
  %v886 = vrot.slane %v879, %v885
  %v887 = vcombine.low %v858, %v865
  %v889 = vunpack.c.l.s4 1983009808
  %v890 = vunpack.c.0.s8 %v889
  %v891 = vlaneseq
  %v892 = vshrl.u32 %v891, 7
  %v893 = vsub.s32 %v890, %v892
  %v894 = vrot.slane %v887, %v893
  %v895 = vcombine.low %v868, %v869
  %v897 = vunpack.c.l.s4 1983009808
  %v898 = vunpack.c.0.s8 %v897
  %v899 = vlaneseq
  %v900 = vshrl.u32 %v899, 7
  %v901 = vsub.s32 %v898, %v900
  %v902 = vrot.slane %v895, %v901
  %v903 = vcombine.low %v878, %v886
  %v905 = vunpack.c.l.s4 1934713408
  %v906 = vunpack.c.0.s8 %v905
  %v907 = vlaneseq
  %v908 = vshrl.u32 %v907, 7
  %v909 = vsub.s32 %v906, %v908
  %v910 = vrot.slane %v903, %v909
  %v911 = vcombine.low %v894, %v902
  %v913 = vunpack.c.l.s4 1934713408
  %v914 = vunpack.c.0.s8 %v913
  %v915 = vlaneseq
  %v916 = vshrl.u32 %v915, 7
  %v917 = vsub.s32 %v914, %v916
  %v918 = vrot.slane %v911, %v917
  %v919 = vcombine.low %v910, %v918
  %v920 = vcombine.high %v910, %v918
  %v922 = vunpack.c.l.s4 1934713408
  %v923 = vunpack.c.0.s8 %v922
  %v924 = vlaneseq
  %v925 = vshrl.u32 %v924, 7
  %v926 = vsub.s32 %v923, %v925
  %v927 = vrot.slane %v870, %v926
  %v929 = vunpack.c.l.s4 1934713408
  %v930 = vunpack.c.0.s8 %v929
  %v931 = vlaneseq
  %v932 = vshrl.u32 %v931, 7
  %v933 = vsub.s32 %v930, %v932
  %v934 = vrot.slane %v927, %v933
  %v935 = vcombine.high %v934, 0.0
  %938 = vrot.lane.b32.xlu0 %v920, 64
  %v939 = vpop.permute.xlu0 %938
  %940 = vrot.lane.b32.xlu0 %v935, 64
  %v941 = vpop.permute.xlu0 %940
  %v944 = vsel %vm411, %v919, %v939
  %v945 = vsel %vm411, %v934, %v941
  %v946 = vmul.f32 %v309, 0.125
  %v947 = vpack.c.bf16 %v946, %v364
  %949 = vrot.lane.b32.xlu0 %v947, 64
  %v950 = vpop.permute.xlu0 %949
  %v951 = vpack.c.bf16 %v311, %v305
  %953 = vrot.lane.b32.xlu0 %v951, 64
  %v954 = vpop.permute.xlu0 %953
  %v955 = vpack.c.bf16 %v358, %v353
  %957 = vrot.lane.b32.xlu0 %v955, 64
  %v958 = vpop.permute.xlu0 %957
  %v960 = vshrl.u32 %v951, 16
  %v962 = vshll.u32 %v951, 16
  %v964 = vrot.slane %v962, 1
  %v965 = vor.u32 %v960, %v964
  %v967 = vshrl.u32 %v954, 16
  %v969 = vshll.u32 %v954, 16
  %v971 = vrot.slane %v969, 1
  %v972 = vor.u32 %v967, %v971
  %975 = vxpose.xlu0.c.b16.start [1/8] %v965, 128
  %976 = vxpose.xlu0.c.b16.cont [2/8] 0, 128
  %977 = vxpose.xlu0.c.b16.cont [3/8] 0, 128
  %978 = vxpose.xlu0.c.b16.cont [4/8] 0, 128
  %979 = vxpose.xlu0.c.b16.cont [5/8] 0, 128
  %980 = vxpose.xlu0.c.b16.cont [6/8] 0, 128
  %981 = vxpose.xlu0.c.b16.cont [7/8] 0, 128
  %982 = vxpose.xlu0.c.b16.end [8/8] 0, 128
  %v983 = vpop.trf.xlu0
  %v984 = vpop.trf.xlu0
  %v985 = vpop.trf.xlu0
  %v986 = vpop.trf.xlu0
  %v987 = vpop.trf.xlu0
  %v988 = vpop.trf.xlu0
  %v989 = vpop.trf.xlu0
  %v990 = vpop.trf.xlu0
  %991 = vxpose.xlu0.c.b16.start [1/8] %v972, 128
  %992 = vxpose.xlu0.c.b16.cont [2/8] 0, 128
  %993 = vxpose.xlu0.c.b16.cont [3/8] 0, 128
  %994 = vxpose.xlu0.c.b16.cont [4/8] 0, 128
  %995 = vxpose.xlu0.c.b16.cont [5/8] 0, 128
  %996 = vxpose.xlu0.c.b16.cont [6/8] 0, 128
  %997 = vxpose.xlu0.c.b16.cont [7/8] 0, 128
  %998 = vxpose.xlu0.c.b16.end [8/8] 0, 128
  %v999 = vpop.trf.xlu0
  %v1000 = vpop.trf.xlu0
  %v1001 = vpop.trf.xlu0
  %v1002 = vpop.trf.xlu0
  %v1003 = vpop.trf.xlu0
  %v1004 = vpop.trf.xlu0
  %v1005 = vpop.trf.xlu0
  %v1006 = vpop.trf.xlu0
  %v1008 = vshrl.u32 %v947, 16
  %v1010 = vshll.u32 %v947, 16
  %v1012 = vrot.slane %v1010, 1
  %v1013 = vor.u32 %v1008, %v1012
  %v1015 = vsel %vm411, %v1013, 0
  %1017 = vmatprep.subr.bf16.mxu0 0
  %1018 = vmatpush1.bf16.msra.mxu0 %v983
  %1019 = vmatprep.subr.bf16.mxu0 0
  %1020 = vmatpush1.bf16.msra.mxu0 %v984
  %1021 = vmatprep.subr.bf16.mxu0 0
  %1022 = vmatpush1.bf16.msra.mxu0 %v985
  %1023 = vmatprep.subr.bf16.mxu0 0
  %1024 = vmatpush1.bf16.msra.mxu0 %v986
  %1025 = vmatprep.subr.bf16.mxu0 0
  %1026 = vmatpush1.bf16.msra.mxu0 0
  %1027 = vmatprep.subr.bf16.mxu0 0
  %1028 = vmatpush1.bf16.msra.mxu0 0
  %1029 = vmatprep.subr.bf16.mxu0 0
  %1030 = vmatpush1.bf16.msra.mxu0 0
  %1031 = vmatprep.subr.bf16.mxu0 0
  %1032 = vmatpush1.bf16.msra.mxu0 0
  %1033 = vmatprep.subr.bf16.mxu0 0
  %1034 = vmatpush1.bf16.msra.mxu0 0
  %1035 = vmatprep.subr.bf16.mxu0 0
  %1036 = vmatpush1.bf16.msra.mxu0 0
  %1037 = vmatprep.subr.bf16.mxu0 0
  %1038 = vmatpush1.bf16.msra.mxu0 0
  %1039 = vmatprep.subr.bf16.mxu0 0
  %1040 = vmatpush1.bf16.msra.mxu0 0
  %1041 = vmatprep.subr.bf16.mxu0 0
  %1042 = vmatpush1.bf16.msra.mxu0 0
  %1043 = vmatprep.subr.bf16.mxu0 0
  %1044 = vmatpush1.bf16.msra.mxu0 0
  %1045 = vmatprep.subr.bf16.mxu0 0
  %1046 = vmatpush1.bf16.msra.mxu0 0
  %1047 = vmatprep.subr.bf16.mxu0 0
  %1048 = vmatpush1.bf16.msra.mxu0 0
  %1049 = vmatprep.mubr.bf16.mxu0 0
  %1050 = vmatmul.mubr.bf16.gmra.mrb[0].mxu0 %v1015
  %v1051 = vpop.f32.mrb[0].mxu0
  %v1052 = vadd.f32 0.0, %v1051
  %v1053 = vpop.f32.mrb[0].mxu0
  %v1054 = vpop.f32.mrb[0].mxu0
  %v1055 = vadd.f32 0.0, %v1054
  %v1056 = vpop.f32.mrb[0].mxu0
  %1057 = vdwg.mxu0
  %v1059 = vshrl.u32 %v950, 16
  %v1061 = vshll.u32 %v950, 16
  %v1063 = vrot.slane %v1061, 1
  %v1064 = vor.u32 %v1059, %v1063
  %v1066 = vsel %vm411, %v1064, 0
  %1068 = vmatprep.subr.bf16.mxu0 0
  %1069 = vmatpush1.bf16.msra.mxu0 %v999
  %1070 = vmatprep.subr.bf16.mxu0 0
  %1071 = vmatpush1.bf16.msra.mxu0 %v1000
  %1072 = vmatprep.subr.bf16.mxu0 0
  %1073 = vmatpush1.bf16.msra.mxu0 %v1001
  %1074 = vmatprep.subr.bf16.mxu0 0
  %1075 = vmatpush1.bf16.msra.mxu0 %v1002
  %1076 = vmatprep.subr.bf16.mxu0 0
  %1077 = vmatpush1.bf16.msra.mxu0 0
  %1078 = vmatprep.subr.bf16.mxu0 0
  %1079 = vmatpush1.bf16.msra.mxu0 0
  %1080 = vmatprep.subr.bf16.mxu0 0
  %1081 = vmatpush1.bf16.msra.mxu0 0
  %1082 = vmatprep.subr.bf16.mxu0 0
  %1083 = vmatpush1.bf16.msra.mxu0 0
  %1084 = vmatprep.subr.bf16.mxu0 0
  %1085 = vmatpush1.bf16.msra.mxu0 0
  %1086 = vmatprep.subr.bf16.mxu0 0
  %1087 = vmatpush1.bf16.msra.mxu0 0
  %1088 = vmatprep.subr.bf16.mxu0 0
  %1089 = vmatpush1.bf16.msra.mxu0 0
  %1090 = vmatprep.subr.bf16.mxu0 0
  %1091 = vmatpush1.bf16.msra.mxu0 0
  %1092 = vmatprep.subr.bf16.mxu0 0
  %1093 = vmatpush1.bf16.msra.mxu0 0
  %1094 = vmatprep.subr.bf16.mxu0 0
  %1095 = vmatpush1.bf16.msra.mxu0 0
  %1096 = vmatprep.subr.bf16.mxu0 0
  %1097 = vmatpush1.bf16.msra.mxu0 0
  %1098 = vmatprep.subr.bf16.mxu0 0
  %1099 = vmatpush1.bf16.msra.mxu0 0
  %1100 = vmatprep.mubr.bf16.mxu0 0
  %1101 = vmatmul.mubr.bf16.gmra.mrb[0].mxu0 %v1066
  %v1102 = vpop.f32.mrb[0].mxu0
  %v1103 = vadd.f32 0.0, %v1102
  %v1104 = vpop.f32.mrb[0].mxu0
  %v1105 = vpop.f32.mrb[0].mxu0
  %v1106 = vadd.f32 0.0, %v1105
  %v1107 = vpop.f32.mrb[0].mxu0
  %1108 = vdwg.mxu0
  %v1109 = vsel %vm500, %v1052, -inf
  %1110 = vmax.xlane.f32.xlu0 %v1109
  %v1111 = vpop.xlane.xlu0 %1110
  %v1112 = vsel %vm504, %v1055, -inf
  %1113 = vmax.xlane.f32.xlu0 %v1112
  %v1114 = vpop.xlane.xlu0 %1113
  %v1115 = vsel %vm500, %v1103, -inf
  %1116 = vmax.xlane.f32.xlu0 %v1115
  %v1117 = vpop.xlane.xlu0 %1116
  %v1118 = vsel %vm504, %v1106, -inf
  %1119 = vmax.xlane.f32.xlu0 %v1118
  %v1120 = vpop.xlane.xlu0 %1119
  %v1121 = vsub.f32 %v1052, %v1111
  %v1122 = vsub.f32 %v1055, %v1114
  %v1123 = vsub.f32 %v1103, %v1117
  %v1124 = vsub.f32 %v1106, %v1120
  %v1125 = vmul.f32 %v1121, 1.442695
  %v1126 = vpow.pop %v1125
  %v1127 = vmul.f32 %v1122, 1.442695
  %v1128 = vpow.pop %v1127
  %v1129 = vmul.f32 %v1123, 1.442695
  %v1130 = vpow.pop %v1129
  %v1131 = vmul.f32 %v1124, 1.442695
  %v1132 = vpow.pop %v1131
  %v1133 = vsel %vm500, %v1126, 0.0
  %1134 = vadd.xlane.f32.xlu0 %v1133
  %v1135 = vpop.xlane.xlu0 %1134
  %v1136 = vsel %vm504, %v1128, 0.0
  %1137 = vadd.xlane.f32.xlu0 %v1136
  %v1138 = vpop.xlane.xlu0 %1137
  %v1139 = vsel %vm500, %v1130, 0.0
  %1140 = vadd.xlane.f32.xlu0 %v1139
  %v1141 = vpop.xlane.xlu0 %1140
  %v1142 = vsel %vm504, %v1132, 0.0
  %1143 = vadd.xlane.f32.xlu0 %v1142
  %v1144 = vpop.xlane.xlu0 %1143
  %v1145 = vrcp.pop %v1135
  %v1146 = vrcp.pop %v1138
  %v1147 = vrcp.pop %v1141
  %v1148 = vrcp.pop %v1144
  %v1149 = vmul.f32 %v1126, %v1145
  %v1150 = vmul.f32 %v1128, %v1146
  %v1151 = vmul.f32 %v1130, %v1147
  %v1152 = vmul.f32 %v1132, %v1148
  %v1153 = vpack.c.bf16 %v1150, %v1149
  %v1154 = vpack.c.bf16 %v1152, %v1151
  %v1156 = vshrl.u32 %v955, 16
  %v1158 = vshll.u32 %v955, 16
  %v1160 = vrot.slane %v1158, 1
  %v1161 = vor.u32 %v1156, %v1160
  %v1163 = vshrl.u32 %v958, 16
  %v1165 = vshll.u32 %v958, 16
  %v1167 = vrot.slane %v1165, 1
  %v1168 = vor.u32 %v1163, %v1167
  %1171 = vxpose.xlu0.c.b16.start [1/8] %v1161, 128
  %1172 = vxpose.xlu0.c.b16.cont [2/8] 0, 128
  %1173 = vxpose.xlu0.c.b16.cont [3/8] 0, 128
  %1174 = vxpose.xlu0.c.b16.cont [4/8] 0, 128
  %1175 = vxpose.xlu0.c.b16.cont [5/8] 0, 128
  %1176 = vxpose.xlu0.c.b16.cont [6/8] 0, 128
  %1177 = vxpose.xlu0.c.b16.cont [7/8] 0, 128
  %1178 = vxpose.xlu0.c.b16.end [8/8] 0, 128
  %v1179 = vpop.trf.xlu0
  %v1180 = vpop.trf.xlu0
  %v1181 = vpop.trf.xlu0
  %v1182 = vpop.trf.xlu0
  %v1183 = vpop.trf.xlu0
  %v1184 = vpop.trf.xlu0
  %v1185 = vpop.trf.xlu0
  %v1186 = vpop.trf.xlu0
  %1187 = vxpose.xlu0.c.b16.start [1/8] %v1168, 128
  %1188 = vxpose.xlu0.c.b16.cont [2/8] 0, 128
  %1189 = vxpose.xlu0.c.b16.cont [3/8] 0, 128
  %1190 = vxpose.xlu0.c.b16.cont [4/8] 0, 128
  %1191 = vxpose.xlu0.c.b16.cont [5/8] 0, 128
  %1192 = vxpose.xlu0.c.b16.cont [6/8] 0, 128
  %1193 = vxpose.xlu0.c.b16.cont [7/8] 0, 128
  %1194 = vxpose.xlu0.c.b16.end [8/8] 0, 128
  %v1195 = vpop.trf.xlu0
  %v1196 = vpop.trf.xlu0
  %v1197 = vpop.trf.xlu0
  %v1198 = vpop.trf.xlu0
  %v1199 = vpop.trf.xlu0
  %v1200 = vpop.trf.xlu0
  %v1201 = vpop.trf.xlu0
  %v1202 = vpop.trf.xlu0
  %v1204 = vsel %vm500, %v1179, 0
  %v1207 = vsel %vm500, %v1180, 0
  %v1210 = vsel %vm500, %v1181, 0
  %v1213 = vsel %vm500, %v1182, 0
  %v1216 = vsel %vm500, %v1153, 0
  %1218 = vmatprep.subr.bf16.mxu0 0
  %1219 = vmatpush1.bf16.xpose.msra.mxu0 %v1216
  %1220 = vmatprep.subr.bf16.mxu0 0
  %1221 = vmatpush1.bf16.xpose.msra.mxu0 0
  %1222 = vmatprep.subr.bf16.mxu0 0
  %1223 = vmatpush1.bf16.xpose.msra.mxu0 0
  %1224 = vmatprep.subr.bf16.mxu0 0
  %1225 = vmatpush1.bf16.xpose.msra.mxu0 0
  %1226 = vmatprep.subr.bf16.mxu0 0
  %1227 = vmatpush1.bf16.xpose.msra.mxu0 0
  %1228 = vmatprep.subr.bf16.mxu0 0
  %1229 = vmatpush1.bf16.xpose.msra.mxu0 0
  %1230 = vmatprep.subr.bf16.mxu0 0
  %1231 = vmatpush1.bf16.xpose.msra.mxu0 0
  %1232 = vmatprep.subr.bf16.mxu0 0
  %1233 = vmatpush1.bf16.xpose.msra.mxu0 0
  %1234 = vmatprep.subr.bf16.mxu0 0
  %1235 = vmatpush1.bf16.xpose.msra.mxu0 0
  %1236 = vmatprep.subr.bf16.mxu0 0
  %1237 = vmatpush1.bf16.xpose.msra.mxu0 0
  %1238 = vmatprep.subr.bf16.mxu0 0
  %1239 = vmatpush1.bf16.xpose.msra.mxu0 0
  %1240 = vmatprep.subr.bf16.mxu0 0
  %1241 = vmatpush1.bf16.xpose.msra.mxu0 0
  %1242 = vmatprep.subr.bf16.mxu0 0
  %1243 = vmatpush1.bf16.xpose.msra.mxu0 0
  %1244 = vmatprep.subr.bf16.mxu0 0
  %1245 = vmatpush1.bf16.xpose.msra.mxu0 0
  %1246 = vmatprep.subr.bf16.mxu0 0
  %1247 = vmatpush1.bf16.xpose.msra.mxu0 0
  %1248 = vmatprep.subr.bf16.mxu0 0
  %1249 = vmatpush1.bf16.xpose.msra.mxu0 0
  %1250 = vmatprep.mubr.bf16.mxu0 0
  %1251 = vmatmul.mubr.bf16.gmra.mrb[0].mxu0 %v1204
  %v1252 = vpop.f32.mrb[0].mxu0
  %v1253 = vadd.f32 0.0, %v1252
  %v1254 = vpop.f32.mrb[0].mxu0
  %v1255 = vpop.f32.mrb[0].mxu0
  %v1256 = vadd.f32 0.0, %v1255
  %v1257 = vpop.f32.mrb[0].mxu0
  %1258 = vmatprep.mubr.bf16.mxu0 0
  %1259 = vmatmul.mubr.bf16.gmra.mrb[0].mxu0 %v1207
  %v1260 = vpop.f32.mrb[0].mxu0
  %v1261 = vadd.f32 0.0, %v1260
  %v1262 = vpop.f32.mrb[0].mxu0
  %v1263 = vpop.f32.mrb[0].mxu0
  %v1264 = vadd.f32 0.0, %v1263
  %v1265 = vpop.f32.mrb[0].mxu0
  %1266 = vmatprep.mubr.bf16.mxu0 0
  %1267 = vmatmul.mubr.bf16.gmra.mrb[0].mxu0 %v1210
  %v1268 = vpop.f32.mrb[0].mxu0
  %v1269 = vadd.f32 0.0, %v1268
  %v1270 = vpop.f32.mrb[0].mxu0
  %v1271 = vpop.f32.mrb[0].mxu0
  %v1272 = vadd.f32 0.0, %v1271
  %v1273 = vpop.f32.mrb[0].mxu0
  %1274 = vmatprep.mubr.bf16.mxu0 0
  %1275 = vmatmul.mubr.bf16.gmra.mrb[0].mxu0 %v1213
  %v1276 = vpop.f32.mrb[0].mxu0
  %v1277 = vadd.f32 0.0, %v1276
  %v1278 = vpop.f32.mrb[0].mxu0
  %v1279 = vpop.f32.mrb[0].mxu0
  %v1280 = vadd.f32 0.0, %v1279
  %v1281 = vpop.f32.mrb[0].mxu0
  %1282 = vdwg.mxu0
  %v1284 = vsel %vm500, %v1195, 0
  %v1287 = vsel %vm500, %v1196, 0
  %v1290 = vsel %vm500, %v1197, 0
  %v1293 = vsel %vm500, %v1198, 0
  %v1296 = vsel %vm500, %v1154, 0
  %1298 = vmatprep.subr.bf16.mxu0 0
  %1299 = vmatpush1.bf16.xpose.msra.mxu0 %v1296
  %1300 = vmatprep.subr.bf16.mxu0 0
  %1301 = vmatpush1.bf16.xpose.msra.mxu0 0
  %1302 = vmatprep.subr.bf16.mxu0 0
  %1303 = vmatpush1.bf16.xpose.msra.mxu0 0
  %1304 = vmatprep.subr.bf16.mxu0 0
  %1305 = vmatpush1.bf16.xpose.msra.mxu0 0
  %1306 = vmatprep.subr.bf16.mxu0 0
  %1307 = vmatpush1.bf16.xpose.msra.mxu0 0
  %1308 = vmatprep.subr.bf16.mxu0 0
  %1309 = vmatpush1.bf16.xpose.msra.mxu0 0
  %1310 = vmatprep.subr.bf16.mxu0 0
  %1311 = vmatpush1.bf16.xpose.msra.mxu0 0
  %1312 = vmatprep.subr.bf16.mxu0 0
  %1313 = vmatpush1.bf16.xpose.msra.mxu0 0
  %1314 = vmatprep.subr.bf16.mxu0 0
  %1315 = vmatpush1.bf16.xpose.msra.mxu0 0
  %1316 = vmatprep.subr.bf16.mxu0 0
  %1317 = vmatpush1.bf16.xpose.msra.mxu0 0
  %1318 = vmatprep.subr.bf16.mxu0 0
  %1319 = vmatpush1.bf16.xpose.msra.mxu0 0
  %1320 = vmatprep.subr.bf16.mxu0 0
  %1321 = vmatpush1.bf16.xpose.msra.mxu0 0
  %1322 = vmatprep.subr.bf16.mxu0 0
  %1323 = vmatpush1.bf16.xpose.msra.mxu0 0
  %1324 = vmatprep.subr.bf16.mxu0 0
  %1325 = vmatpush1.bf16.xpose.msra.mxu0 0
  %1326 = vmatprep.subr.bf16.mxu0 0
  %1327 = vmatpush1.bf16.xpose.msra.mxu0 0
  %1328 = vmatprep.subr.bf16.mxu0 0
  %1329 = vmatpush1.bf16.xpose.msra.mxu0 0
  %1330 = vmatprep.mubr.bf16.mxu0 0
  %1331 = vmatmul.mubr.bf16.gmra.mrb[0].mxu0 %v1284
  %v1332 = vpop.f32.mrb[0].mxu0
  %v1333 = vadd.f32 0.0, %v1332
  %v1334 = vpop.f32.mrb[0].mxu0
  %v1335 = vpop.f32.mrb[0].mxu0
  %v1336 = vadd.f32 0.0, %v1335
  %v1337 = vpop.f32.mrb[0].mxu0
  %1338 = vmatprep.mubr.bf16.mxu0 0
  %1339 = vmatmul.mubr.bf16.gmra.mrb[0].mxu0 %v1287
  %v1340 = vpop.f32.mrb[0].mxu0
  %v1341 = vadd.f32 0.0, %v1340
  %v1342 = vpop.f32.mrb[0].mxu0
  %v1343 = vpop.f32.mrb[0].mxu0
  %v1344 = vadd.f32 0.0, %v1343
  %v1345 = vpop.f32.mrb[0].mxu0
  %1346 = vmatprep.mubr.bf16.mxu0 0
  %1347 = vmatmul.mubr.bf16.gmra.mrb[0].mxu0 %v1290
  %v1348 = vpop.f32.mrb[0].mxu0
  %v1349 = vadd.f32 0.0, %v1348
  %v1350 = vpop.f32.mrb[0].mxu0
  %v1351 = vpop.f32.mrb[0].mxu0
  %v1352 = vadd.f32 0.0, %v1351
  %v1353 = vpop.f32.mrb[0].mxu0
  %1354 = vmatprep.mubr.bf16.mxu0 0
  %1355 = vmatmul.mubr.bf16.gmra.mrb[0].mxu0 %v1293
  %v1356 = vpop.f32.mrb[0].mxu0
  %v1357 = vadd.f32 0.0, %v1356
  %v1358 = vpop.f32.mrb[0].mxu0
  %v1359 = vpop.f32.mrb[0].mxu0
  %v1360 = vadd.f32 0.0, %v1359
  %v1361 = vpop.f32.mrb[0].mxu0
  %1362 = vdwg.mxu0
  %1363 = vxpose.xlu0.b32.start [1/16] %v1253, 128
  %1364 = vxpose.xlu0.b32.cont [2/16] %v1256, 128
  %1365 = vxpose.xlu0.b32.cont [3/16] %v1261, 128
  %1366 = vxpose.xlu0.b32.cont [4/16] %v1264, 128
  %1367 = vxpose.xlu0.b32.cont [5/16] %v1269, 128
  %1368 = vxpose.xlu0.b32.cont [6/16] %v1272, 128
  %1369 = vxpose.xlu0.b32.cont [7/16] %v1277, 128
  %1370 = vxpose.xlu0.b32.cont [8/16] %v1280, 128
  %1371 = vxpose.xlu0.b32.cont [9/16] 0.0, 128
  %1372 = vxpose.xlu0.b32.cont [10/16] 0.0, 128
  %1373 = vxpose.xlu0.b32.cont [11/16] 0.0, 128
  %1374 = vxpose.xlu0.b32.cont [12/16] 0.0, 128
  %1375 = vxpose.xlu0.b32.cont [13/16] 0.0, 128
  %1376 = vxpose.xlu0.b32.cont [14/16] 0.0, 128
  %1377 = vxpose.xlu0.b32.cont [15/16] 0.0, 128
  %1378 = vxpose.xlu0.b32.end [16/16] 0.0, 128
  %v1379 = vpop.trf.xlu0
  %v1380 = vpop.trf.xlu0
  %v1381 = vpop.trf.xlu0
  %v1382 = vpop.trf.xlu0
  %v1383 = vpop.trf.xlu0
  %v1384 = vpop.trf.xlu0
  %v1385 = vpop.trf.xlu0
  %v1386 = vpop.trf.xlu0
  %v1387 = vpop.trf.xlu0
  %v1388 = vpop.trf.xlu0
  %v1389 = vpop.trf.xlu0
  %v1390 = vpop.trf.xlu0
  %v1391 = vpop.trf.xlu0
  %v1392 = vpop.trf.xlu0
  %v1393 = vpop.trf.xlu0
  %v1394 = vpop.trf.xlu0
  %1395 = vxpose.xlu0.b32.start [1/16] %v1333, 128
  %1396 = vxpose.xlu0.b32.cont [2/16] %v1336, 128
  %1397 = vxpose.xlu0.b32.cont [3/16] %v1341, 128
  %1398 = vxpose.xlu0.b32.cont [4/16] %v1344, 128
  %1399 = vxpose.xlu0.b32.cont [5/16] %v1349, 128
  %1400 = vxpose.xlu0.b32.cont [6/16] %v1352, 128
  %1401 = vxpose.xlu0.b32.cont [7/16] %v1357, 128
  %1402 = vxpose.xlu0.b32.cont [8/16] %v1360, 128
  %1403 = vxpose.xlu0.b32.cont [9/16] 0.0, 128
  %1404 = vxpose.xlu0.b32.cont [10/16] 0.0, 128
  %1405 = vxpose.xlu0.b32.cont [11/16] 0.0, 128
  %1406 = vxpose.xlu0.b32.cont [12/16] 0.0, 128
  %1407 = vxpose.xlu0.b32.cont [13/16] 0.0, 128
  %1408 = vxpose.xlu0.b32.cont [14/16] 0.0, 128
  %1409 = vxpose.xlu0.b32.cont [15/16] 0.0, 128
  %1410 = vxpose.xlu0.b32.end [16/16] 0.0, 128
  %v1411 = vpop.trf.xlu0
  %v1412 = vpop.trf.xlu0
  %v1413 = vpop.trf.xlu0
  %v1414 = vpop.trf.xlu0
  %v1415 = vpop.trf.xlu0
  %v1416 = vpop.trf.xlu0
  %v1417 = vpop.trf.xlu0
  %v1418 = vpop.trf.xlu0
  %v1419 = vpop.trf.xlu0
  %v1420 = vpop.trf.xlu0
  %v1421 = vpop.trf.xlu0
  %v1422 = vpop.trf.xlu0
  %v1423 = vpop.trf.xlu0
  %v1424 = vpop.trf.xlu0
  %v1425 = vpop.trf.xlu0
  %v1426 = vpop.trf.xlu0
  %v1427 = vcombine.high %v1379, 0.0
  %v1429 = vunpack.c.l.s4 1983009808
  %v1430 = vunpack.c.0.s8 %v1429
  %v1431 = vlaneseq
  %v1432 = vshrl.u32 %v1431, 7
  %v1433 = vsub.s32 %v1430, %v1432
  %v1434 = vrot.slane %v1379, %v1433
  %v1436 = vunpack.c.l.s4 1983009808
  %v1437 = vunpack.c.0.s8 %v1436
  %v1438 = vlaneseq
  %v1439 = vshrl.u32 %v1438, 7
  %v1440 = vsub.s32 %v1437, %v1439
  %v1441 = vrot.slane %v1427, %v1440
  %v1442 = vcombine.high %v1411, 0.0
  %v1444 = vunpack.c.l.s4 1983009808
  %v1445 = vunpack.c.0.s8 %v1444
  %v1446 = vlaneseq
  %v1447 = vshrl.u32 %v1446, 7
  %v1448 = vsub.s32 %v1445, %v1447
  %v1449 = vrot.slane %v1411, %v1448
  %v1451 = vunpack.c.l.s4 1983009808
  %v1452 = vunpack.c.0.s8 %v1451
  %v1453 = vlaneseq
  %v1454 = vshrl.u32 %v1453, 7
  %v1455 = vsub.s32 %v1452, %v1454
  %v1456 = vrot.slane %v1442, %v1455
  %v1457 = vcombine.low %v1434, %v1449
  %v1458 = vcombine.high %v1434, %v1449
  %v1460 = vunpack.c.l.s4 1934713408
  %v1461 = vunpack.c.0.s8 %v1460
  %v1462 = vlaneseq
  %v1463 = vshrl.u32 %v1462, 7
  %v1464 = vsub.s32 %v1461, %v1463
  %v1465 = vrot.slane %v1457, %v1464
  %v1467 = vunpack.c.l.s4 1934713408
  %v1468 = vunpack.c.0.s8 %v1467
  %v1469 = vlaneseq
  %v1470 = vshrl.u32 %v1469, 7
  %v1471 = vsub.s32 %v1468, %v1470
  %v1472 = vrot.slane %v1458, %v1471
  %v1473 = vcombine.low %v1441, %v1456
  %v1474 = vcombine.high %v1441, %v1456
  %v1476 = vunpack.c.l.s4 1934713408
  %v1477 = vunpack.c.0.s8 %v1476
  %v1478 = vlaneseq
  %v1479 = vshrl.u32 %v1478, 7
  %v1480 = vsub.s32 %v1477, %v1479
  %v1481 = vrot.slane %v1473, %v1480
  %v1483 = vunpack.c.l.s4 1934713408
  %v1484 = vunpack.c.0.s8 %v1483
  %v1485 = vlaneseq
  %v1486 = vshrl.u32 %v1485, 7
  %v1487 = vsub.s32 %v1484, %v1486
  %v1488 = vrot.slane %v1474, %v1487
  %v1489 = vcombine.high %v1465, 0.0
  %v1490 = vcombine.high %v1472, 0.0
  %v1491 = vcombine.high %v1481, 0.0
  %v1492 = vcombine.high %v1488, 0.0
  %v1493 = vcombine.low %v1380, %v1412
  %v1494 = vcombine.low %v1465, %v1472
  %v1496 = vunpack.c.l.s4 1983009808
  %v1497 = vunpack.c.0.s8 %v1496
  %v1498 = vlaneseq
  %v1499 = vshrl.u32 %v1498, 7
  %v1500 = vsub.s32 %v1497, %v1499
  %v1501 = vrot.slane %v1494, %v1500
  %v1502 = vcombine.low %v1489, %v1490
  %v1504 = vunpack.c.l.s4 1983009808
  %v1505 = vunpack.c.0.s8 %v1504
  %v1506 = vlaneseq
  %v1507 = vshrl.u32 %v1506, 7
  %v1508 = vsub.s32 %v1505, %v1507
  %v1509 = vrot.slane %v1502, %v1508
  %v1510 = vcombine.low %v1481, %v1488
  %v1512 = vunpack.c.l.s4 1983009808
  %v1513 = vunpack.c.0.s8 %v1512
  %v1514 = vlaneseq
  %v1515 = vshrl.u32 %v1514, 7
  %v1516 = vsub.s32 %v1513, %v1515
  %v1517 = vrot.slane %v1510, %v1516
  %v1518 = vcombine.low %v1491, %v1492
  %v1520 = vunpack.c.l.s4 1983009808
  %v1521 = vunpack.c.0.s8 %v1520
  %v1522 = vlaneseq
  %v1523 = vshrl.u32 %v1522, 7
  %v1524 = vsub.s32 %v1521, %v1523
  %v1525 = vrot.slane %v1518, %v1524
  %v1526 = vcombine.low %v1501, %v1509
  %v1528 = vunpack.c.l.s4 1934713408
  %v1529 = vunpack.c.0.s8 %v1528
  %v1530 = vlaneseq
  %v1531 = vshrl.u32 %v1530, 7
  %v1532 = vsub.s32 %v1529, %v1531
  %v1533 = vrot.slane %v1526, %v1532
  %v1534 = vcombine.low %v1517, %v1525
  %v1536 = vunpack.c.l.s4 1934713408
  %v1537 = vunpack.c.0.s8 %v1536
  %v1538 = vlaneseq
  %v1539 = vshrl.u32 %v1538, 7
  %v1540 = vsub.s32 %v1537, %v1539
  %v1541 = vrot.slane %v1534, %v1540
  %v1542 = vcombine.low %v1533, %v1541
  %v1543 = vcombine.high %v1533, %v1541
  %v1545 = vunpack.c.l.s4 1934713408
  %v1546 = vunpack.c.0.s8 %v1545
  %v1547 = vlaneseq
  %v1548 = vshrl.u32 %v1547, 7
  %v1549 = vsub.s32 %v1546, %v1548
  %v1550 = vrot.slane %v1493, %v1549
  %v1552 = vunpack.c.l.s4 1934713408
  %v1553 = vunpack.c.0.s8 %v1552
  %v1554 = vlaneseq
  %v1555 = vshrl.u32 %v1554, 7
  %v1556 = vsub.s32 %v1553, %v1555
  %v1557 = vrot.slane %v1550, %v1556
  %v1558 = vcombine.high %v1557, 0.0
  %1561 = vrot.lane.b32.xlu0 %v1543, 64
  %v1562 = vpop.permute.xlu0 %1561
  %1563 = vrot.lane.b32.xlu0 %v1558, 64
  %v1564 = vpop.permute.xlu0 %1563
  %v1567 = vsel %vm411, %v1542, %v1562
  %v1568 = vsel %vm411, %v1557, %v1564
  %vm1571 = vcmask 1040384
  %v1572 = vrot.slane %v1567, 7
  %v1573 = vrot.slane %v1568, 7
  %v1574 = vsel %vm1571, %v1572, %v1573
  %v1577 = vsel %vm1571, %v945, %v1572
  %v1578 = vpack.c.bf16 %v1577, %v944
  %v1579 = vpack.c.bf16 %v1574, %v1574
  %v1580 = vld [vmem:[%s4] sm:$0xf]
  %v1581 = vld [vmem:[%s4 + $0x4] sm:$0xf]
  %v1582 = vld [vmem:[%s4 + $0x8] sm:$0xf]
  %v1583 = vld [vmem:[%s4 + $0xc] sm:$0xf]
  %v1584 = vld [vmem:[%s4 + $0x10] sm:$0xf]
  %v1585 = vld [vmem:[%s4 + $0x14] sm:$0xf]
  %v1586 = vld [vmem:[%s4 + $0x18] sm:$0xf]
  %v1587 = vld [vmem:[%s4 + $0x1c] sm:$0xf]
  %v1588 = vld [vmem:[%s4 + $0x20] sm:$0xf]
  %v1589 = vld [vmem:[%s4 + $0x24] sm:$0xf]
  %v1590 = vld [vmem:[%s4 + $0x28] sm:$0xf]
  %v1591 = vld [vmem:[%s4 + $0x2c] sm:$0xf]
  %v1592 = vld [vmem:[%s4 + $0x30] sm:$0xf]
  %v1593 = vld [vmem:[%s4 + $0x34] sm:$0xf]
  %v1594 = vld [vmem:[%s4 + $0x38] sm:$0xf]
  %v1595 = vld [vmem:[%s4 + $0x3c] sm:$0xf]
  %v1596 = vld [vmem:[%s5] sm:$0x1]
  %v1598 = vlaneseq
  %v1599 = vshrl.u32 %v1598, 7
  %v1600 = vsub.s32 0, %v1599
  %v1601 = vrot.slane %v1596, %v1600
  %v1619 = vunpack.c.l.b16 %v1580
  %v1620 = vunpack.c.l.b16 %v1581
  %v1621 = vunpack.c.l.b16 %v1582
  %v1622 = vunpack.c.l.b16 %v1583
  %v1623 = vunpack.c.l.b16 %v1584
  %v1624 = vunpack.c.l.b16 %v1585
  %v1625 = vunpack.c.l.b16 %v1586
  %v1626 = vunpack.c.l.b16 %v1587
  %v1627 = vunpack.c.l.b16 %v1588
  %v1628 = vunpack.c.l.b16 %v1589
  %v1629 = vunpack.c.l.b16 %v1590
  %v1630 = vunpack.c.l.b16 %v1591
  %v1631 = vunpack.c.l.b16 %v1592
  %v1632 = vunpack.c.l.b16 %v1593
  %v1633 = vunpack.c.l.b16 %v1594
  %v1634 = vunpack.c.l.b16 %v1595
  %v1635 = vpack.c.b16 %v1620, %v1619
  %v1636 = vpack.c.b16 %v1622, %v1621
  %v1637 = vpack.c.b16 %v1624, %v1623
  %v1638 = vpack.c.b16 %v1626, %v1625
  %v1639 = vpack.c.b16 %v1628, %v1627
  %v1640 = vpack.c.b16 %v1630, %v1629
  %v1641 = vpack.c.b16 %v1632, %v1631
  %v1642 = vpack.c.b16 %v1634, %v1633
  %1651 = vmatprep.subr.bf16.mxu0 0
  %1652 = vmatpush1.bf16.msra.mxu0 %v1635
  %1653 = vmatprep.subr.bf16.mxu0 0
  %1654 = vmatpush1.bf16.msra.mxu0 %v1636
  %1655 = vmatprep.subr.bf16.mxu0 0
  %1656 = vmatpush1.bf16.msra.mxu0 %v1637
  %1657 = vmatprep.subr.bf16.mxu0 0
  %1658 = vmatpush1.bf16.msra.mxu0 %v1638
  %1659 = vmatprep.subr.bf16.mxu0 0
  %1660 = vmatpush1.bf16.msra.mxu0 %v1639
  %1661 = vmatprep.subr.bf16.mxu0 0
  %1662 = vmatpush1.bf16.msra.mxu0 %v1640
  %1663 = vmatprep.subr.bf16.mxu0 0
  %1664 = vmatpush1.bf16.msra.mxu0 %v1641
  %1665 = vmatprep.subr.bf16.mxu0 0
  %1666 = vmatpush1.bf16.msra.mxu0 %v1642
  %1667 = vmatprep.subr.bf16.mxu0 0
  %1668 = vmatpush1.bf16.msra.mxu0 0
  %1669 = vmatprep.subr.bf16.mxu0 0
  %1670 = vmatpush1.bf16.msra.mxu0 0
  %1671 = vmatprep.subr.bf16.mxu0 0
  %1672 = vmatpush1.bf16.msra.mxu0 0
  %1673 = vmatprep.subr.bf16.mxu0 0
  %1674 = vmatpush1.bf16.msra.mxu0 0
  %1675 = vmatprep.subr.bf16.mxu0 0
  %1676 = vmatpush1.bf16.msra.mxu0 0
  %1677 = vmatprep.subr.bf16.mxu0 0
  %1678 = vmatpush1.bf16.msra.mxu0 0
  %1679 = vmatprep.subr.bf16.mxu0 0
  %1680 = vmatpush1.bf16.msra.mxu0 0
  %1681 = vmatprep.subr.bf16.mxu0 0
  %1682 = vmatpush1.bf16.msra.mxu0 0
  %1683 = vmatprep.mubr.bf16.mxu0 0
  %1684 = vmatmul.mubr.bf16.gmra.mrb[0].mxu0 %v1578
  %v1685 = vpop.f32.mrb[0].mxu0
  %v1686 = vadd.f32 %v1601, %v1685
  %v1687 = vpop.f32.mrb[0].mxu0
  %v1688 = vpop.f32.mrb[0].mxu0
  %v1689 = vadd.f32 %v1601, %v1688
  %v1690 = vpop.f32.mrb[0].mxu0
  %1691 = vmatprep.mubr.bf16.mxu0 0
  %1692 = vmatmul.mubr.bf16.gmra.mrb[0].mxu0 %v1579
  %v1693 = vpop.f32.mrb[0].mxu0
  %v1694 = vadd.f32 %v1601, %v1693
  %v1695 = vpop.f32.mrb[0].mxu0
  %v1696 = vpop.f32.mrb[0].mxu0
  %v1697 = vpop.f32.mrb[0].mxu0
  %1698 = vdwg.mxu0
  %v1699 = vadd.f32 %v42, %v1686
  %v1700 = vadd.f32 %v43, %v1689
  %v1701 = vadd.f32 %v44, %v1694
  %v1702 = vld [vmem:[%s6] sm:$0x1]
  %v1703 = vld [vmem:[%s7] sm:$0x1]
  %1704 = vadd.xlane.f32.xlu0 %v1699
  %v1705 = vpop.xlane.xlu0 %1704
  %1706 = vadd.xlane.f32.xlu0 %v1700
  %v1707 = vpop.xlane.xlu0 %1706
  %v1708 = vsel %vm51, %v1701, 0.0
  %1709 = vadd.xlane.f32.xlu0 %v1708
  %v1710 = vpop.xlane.xlu0 %1709
  %v1711 = vmul.f32 %v1705, %v55
  %v1712 = vmul.f32 %v1707, %v55
  %v1713 = vmul.f32 %v1710, %v55
  %v1714 = vsub.f32 %v1699, %v1711
  %v1715 = vsub.f32 %v1700, %v1712
  %v1716 = vsub.f32 %v1701, %v1713
  %v1717 = vmul.f32 %v1714, %v1714
  %v1718 = vmul.f32 %v1715, %v1715
  %v1719 = vmul.f32 %v1716, %v1716
  %1720 = vadd.xlane.f32.xlu0 %v1717
  %v1721 = vpop.xlane.xlu0 %1720
  %1722 = vadd.xlane.f32.xlu0 %v1718
  %v1723 = vpop.xlane.xlu0 %1722
  %v1724 = vsel %vm51, %v1719, 0.0
  %1725 = vadd.xlane.f32.xlu0 %v1724
  %v1726 = vpop.xlane.xlu0 %1725
  %v1727 = vmul.f32 %v1721, %v55
  %v1728 = vmul.f32 %v1723, %v55
  %v1729 = vmul.f32 %v1726, %v55
  %v1730 = vadd.f32 %v1727, 1e-05
  %v1731 = vadd.f32 %v1728, 1e-05
  %v1732 = vadd.f32 %v1729, 1e-05
  %v1733 = vrsqrt.pop %v1730
  %v1734 = vrsqrt.pop %v1731
  %v1735 = vrsqrt.pop %v1732
  %v1736 = vmul.f32 %v1714, %v1733
  %v1737 = vmul.f32 %v1715, %v1734
  %v1738 = vmul.f32 %v1716, %v1735
  %v1740 = vlaneseq
  %v1741 = vshrl.u32 %v1740, 7
  %v1742 = vsub.s32 0, %v1741
  %v1743 = vrot.slane %v1702, %v1742
  %v1745 = vmul.f32 %v1736, %v1743
  %v1746 = vmul.f32 %v1737, %v1743
  %v1747 = vmul.f32 %v1738, %v1743
  %v1749 = vlaneseq
  %v1750 = vshrl.u32 %v1749, 7
  %v1751 = vsub.s32 0, %v1750
  %v1752 = vrot.slane %v1703, %v1751
  %v1754 = vadd.f32 %v1745, %v1752
  %v1755 = vadd.f32 %v1746, %v1752
  %v1756 = vadd.f32 %v1747, %v1752
  %v1757 = vpack.c.bf16 %v1755, %v1754
  %v1758 = vpack.c.bf16 %v1756, %v1756
  %v1759 = vld [vmem:[%s8] sm:$0xff]
  %v1760 = vld [vmem:[%s8 + $0x8] sm:$0xff]
  %v1761 = vld [vmem:[%s8 + $0x10] sm:$0xff]
  %v1762 = vld [vmem:[%s8 + $0x18] sm:$0xff]
  %v1763 = vld [vmem:[%s8 + $0x20] sm:$0xff]
  %v1764 = vld [vmem:[%s8 + $0x28] sm:$0xff]
  %v1765 = vld [vmem:[%s8 + $0x30] sm:$0xff]
  %v1766 = vld [vmem:[%s8 + $0x38] sm:$0xff]
  %v1767 = vld [vmem:[%s8 + $0x40] sm:$0xff]
  %v1768 = vld [vmem:[%s8 + $0x48] sm:$0xff]
  %v1769 = vld [vmem:[%s8 + $0x50] sm:$0xff]
  %v1770 = vld [vmem:[%s8 + $0x58] sm:$0xff]
  %v1771 = vld [vmem:[%s8 + $0x60] sm:$0xff]
  %v1772 = vld [vmem:[%s8 + $0x68] sm:$0xff]
  %v1773 = vld [vmem:[%s8 + $0x70] sm:$0xff]
  %v1774 = vld [vmem:[%s8 + $0x78] sm:$0xff]
  %v1775 = vld [vmem:[%s9] sm:$0x3]
  %v1777 = vlaneseq
  %v1778 = vshrl.u32 %v1777, 7
  %v1779 = vsub.s32 0, %v1778
  %v1780 = vrot.slane %v1775, %v1779
  %v1781 = vlaneseq
  %v1782 = vshrl.u32 %v1781, 7
  %v1783 = vsub.s32 1, %v1782
  %v1784 = vrot.slane %v1775, %v1783
  %v1803 = vunpack.c.l.b16 %v1759
  %v1804 = vunpack.c.h.b16 %v1759
  %v1805 = vunpack.c.l.b16 %v1760
  %v1806 = vunpack.c.h.b16 %v1760
  %v1807 = vunpack.c.l.b16 %v1761
  %v1808 = vunpack.c.h.b16 %v1761
  %v1809 = vunpack.c.l.b16 %v1762
  %v1810 = vunpack.c.h.b16 %v1762
  %v1811 = vunpack.c.l.b16 %v1763
  %v1812 = vunpack.c.h.b16 %v1763
  %v1813 = vunpack.c.l.b16 %v1764
  %v1814 = vunpack.c.h.b16 %v1764
  %v1815 = vunpack.c.l.b16 %v1765
  %v1816 = vunpack.c.h.b16 %v1765
  %v1817 = vunpack.c.l.b16 %v1766
  %v1818 = vunpack.c.h.b16 %v1766
  %v1819 = vunpack.c.l.b16 %v1767
  %v1820 = vunpack.c.h.b16 %v1767
  %v1821 = vunpack.c.l.b16 %v1768
  %v1822 = vunpack.c.h.b16 %v1768
  %v1823 = vunpack.c.l.b16 %v1769
  %v1824 = vunpack.c.h.b16 %v1769
  %v1825 = vunpack.c.l.b16 %v1770
  %v1826 = vunpack.c.h.b16 %v1770
  %v1827 = vunpack.c.l.b16 %v1771
  %v1828 = vunpack.c.h.b16 %v1771
  %v1829 = vunpack.c.l.b16 %v1772
  %v1830 = vunpack.c.h.b16 %v1772
  %v1831 = vunpack.c.l.b16 %v1773
  %v1832 = vunpack.c.h.b16 %v1773
  %v1833 = vunpack.c.l.b16 %v1774
  %v1834 = vunpack.c.h.b16 %v1774
  %v1835 = vpack.c.b16 %v1805, %v1803
  %v1836 = vpack.c.b16 %v1806, %v1804
  %v1837 = vpack.c.b16 %v1809, %v1807
  %v1838 = vpack.c.b16 %v1810, %v1808
  %v1839 = vpack.c.b16 %v1813, %v1811
  %v1840 = vpack.c.b16 %v1814, %v1812
  %v1841 = vpack.c.b16 %v1817, %v1815
  %v1842 = vpack.c.b16 %v1818, %v1816
  %v1843 = vpack.c.b16 %v1821, %v1819
  %v1844 = vpack.c.b16 %v1822, %v1820
  %v1845 = vpack.c.b16 %v1825, %v1823
  %v1846 = vpack.c.b16 %v1826, %v1824
  %v1847 = vpack.c.b16 %v1829, %v1827
  %v1848 = vpack.c.b16 %v1830, %v1828
  %v1849 = vpack.c.b16 %v1833, %v1831
  %v1850 = vpack.c.b16 %v1834, %v1832
  %1867 = vmatprep.subr.bf16.mxu0 %v1836
  %1868 = vmatpush1.bf16.msra.mxu0 %v1835
  %1869 = vmatprep.subr.bf16.mxu0 %v1838
  %1870 = vmatpush1.bf16.msra.mxu0 %v1837
  %1871 = vmatprep.subr.bf16.mxu0 %v1840
  %1872 = vmatpush1.bf16.msra.mxu0 %v1839
  %1873 = vmatprep.subr.bf16.mxu0 %v1842
  %1874 = vmatpush1.bf16.msra.mxu0 %v1841
  %1875 = vmatprep.subr.bf16.mxu0 %v1844
  %1876 = vmatpush1.bf16.msra.mxu0 %v1843
  %1877 = vmatprep.subr.bf16.mxu0 %v1846
  %1878 = vmatpush1.bf16.msra.mxu0 %v1845
  %1879 = vmatprep.subr.bf16.mxu0 %v1848
  %1880 = vmatpush1.bf16.msra.mxu0 %v1847
  %1881 = vmatprep.subr.bf16.mxu0 %v1850
  %1882 = vmatpush1.bf16.msra.mxu0 %v1849
  %1883 = vmatprep.subr.bf16.mxu0 0
  %1884 = vmatpush1.bf16.msra.mxu0 0
  %1885 = vmatprep.subr.bf16.mxu0 0
  %1886 = vmatpush1.bf16.msra.mxu0 0
  %1887 = vmatprep.subr.bf16.mxu0 0
  %1888 = vmatpush1.bf16.msra.mxu0 0
  %1889 = vmatprep.subr.bf16.mxu0 0
  %1890 = vmatpush1.bf16.msra.mxu0 0
  %1891 = vmatprep.subr.bf16.mxu0 0
  %1892 = vmatpush1.bf16.msra.mxu0 0
  %1893 = vmatprep.subr.bf16.mxu0 0
  %1894 = vmatpush1.bf16.msra.mxu0 0
  %1895 = vmatprep.subr.bf16.mxu0 0
  %1896 = vmatpush1.bf16.msra.mxu0 0
  %1897 = vmatprep.subr.bf16.mxu0 0
  %1898 = vmatpush1.bf16.msra.mxu0 0
  %1899 = vmatprep.mubr.bf16.mxu0 0
  %1900 = vmatmul.mubr.bf16.gmra.mrb[0].mxu0 %v1757
  %v1901 = vpop.f32.mrb[0].mxu0
  %v1902 = vadd.f32 %v1780, %v1901
  %v1903 = vpop.f32.mrb[0].mxu0
  %v1904 = vadd.f32 %v1784, %v1903
  %v1905 = vpop.f32.mrb[0].mxu0
  %v1906 = vadd.f32 %v1780, %v1905
  %v1907 = vpop.f32.mrb[0].mxu0
  %v1908 = vadd.f32 %v1784, %v1907
  %1909 = vmatprep.mubr.bf16.mxu0 0
  %1910 = vmatmul.mubr.bf16.gmra.mrb[0].mxu0 %v1758
  %v1911 = vpop.f32.mrb[0].mxu0
  %v1912 = vadd.f32 %v1780, %v1911
  %v1913 = vpop.f32.mrb[0].mxu0
  %v1914 = vadd.f32 %v1784, %v1913
  %v1915 = vpop.f32.mrb[0].mxu0
  %v1916 = vpop.f32.mrb[0].mxu0
  %1917 = vdwg.mxu0
  %v1918 = vmul.f32 %v1902, 0.5
  %v1919 = vmul.f32 %v1904, 0.5
  %v1920 = vmul.f32 %v1906, 0.5
  %v1921 = vmul.f32 %v1908, 0.5
  %v1922 = vmul.f32 %v1912, 0.5
  %v1923 = vmul.f32 %v1914, 0.5
  %v1924 = vmul.f32 %v1902, 0.70710677
  %v1925 = vmul.f32 %v1904, 0.70710677
  %v1926 = vmul.f32 %v1906, 0.70710677
  %v1927 = vmul.f32 %v1908, 0.70710677
  %v1928 = vmul.f32 %v1912, 0.70710677
  %v1929 = vmul.f32 %v1914, 0.70710677
  %v1930 = verf.f32.pop %v1924
  %v1931 = verf.f32.pop %v1925
  %v1932 = verf.f32.pop %v1926
  %v1933 = verf.f32.pop %v1927
  %v1934 = verf.f32.pop %v1928
  %v1935 = verf.f32.pop %v1929
  %v1936 = vadd.f32 %v1930, 1.0
  %v1937 = vadd.f32 %v1931, 1.0
  %v1938 = vadd.f32 %v1932, 1.0
  %v1939 = vadd.f32 %v1933, 1.0
  %v1940 = vadd.f32 %v1934, 1.0
  %v1941 = vadd.f32 %v1935, 1.0
  %v1942 = vmul.f32 %v1918, %v1936
  %v1943 = vmul.f32 %v1919, %v1937
  %v1944 = vmul.f32 %v1920, %v1938
  %v1945 = vmul.f32 %v1921, %v1939
  %v1946 = vmul.f32 %v1922, %v1940
  %v1947 = vmul.f32 %v1923, %v1941
  %v1948 = vpack.c.bf16 %v1944, %v1942
  %v1949 = vpack.c.bf16 %v1945, %v1943
  %v1950 = vpack.c.bf16 %v1946, %v1946
  %v1951 = vpack.c.bf16 %v1947, %v1947
  %v1952 = vld [vmem:[%s10] sm:$0xf]
  %v1953 = vld [vmem:[%s10 + $0x4] sm:$0xf]
  %v1954 = vld [vmem:[%s10 + $0x8] sm:$0xf]
  %v1955 = vld [vmem:[%s10 + $0xc] sm:$0xf]
  %v1956 = vld [vmem:[%s10 + $0x10] sm:$0xf]
  %v1957 = vld [vmem:[%s10 + $0x14] sm:$0xf]
  %v1958 = vld [vmem:[%s10 + $0x18] sm:$0xf]
  %v1959 = vld [vmem:[%s10 + $0x1c] sm:$0xf]
  %v1960 = vld [vmem:[%s10 + $0x20] sm:$0xf]
  %v1961 = vld [vmem:[%s10 + $0x24] sm:$0xf]
  %v1962 = vld [vmem:[%s10 + $0x28] sm:$0xf]
  %v1963 = vld [vmem:[%s10 + $0x2c] sm:$0xf]
  %v1964 = vld [vmem:[%s10 + $0x30] sm:$0xf]
  %v1965 = vld [vmem:[%s10 + $0x34] sm:$0xf]
  %v1966 = vld [vmem:[%s10 + $0x38] sm:$0xf]
  %v1967 = vld [vmem:[%s10 + $0x3c] sm:$0xf]
  %v1968 = vld [vmem:[%s10 + $0x40] sm:$0xf]
  %v1969 = vld [vmem:[%s10 + $0x44] sm:$0xf]
  %v1970 = vld [vmem:[%s10 + $0x48] sm:$0xf]
  %v1971 = vld [vmem:[%s10 + $0x4c] sm:$0xf]
  %v1972 = vld [vmem:[%s10 + $0x50] sm:$0xf]
  %v1973 = vld [vmem:[%s10 + $0x54] sm:$0xf]
  %v1974 = vld [vmem:[%s10 + $0x58] sm:$0xf]
  %v1975 = vld [vmem:[%s10 + $0x5c] sm:$0xf]
  %v1976 = vld [vmem:[%s10 + $0x60] sm:$0xf]
  %v1977 = vld [vmem:[%s10 + $0x64] sm:$0xf]
  %v1978 = vld [vmem:[%s10 + $0x68] sm:$0xf]
  %v1979 = vld [vmem:[%s10 + $0x6c] sm:$0xf]
  %v1980 = vld [vmem:[%s10 + $0x70] sm:$0xf]
  %v1981 = vld [vmem:[%s10 + $0x74] sm:$0xf]
  %v1982 = vld [vmem:[%s10 + $0x78] sm:$0xf]
  %v1983 = vld [vmem:[%s10 + $0x7c] sm:$0xf]
  %v1984 = vld [vmem:[%s11] sm:$0x1]
  %v1986 = vlaneseq
  %v1987 = vshrl.u32 %v1986, 7
  %v1988 = vsub.s32 0, %v1987
  %v1989 = vrot.slane %v1984, %v1988
  %v2023 = vunpack.c.l.b16 %v1952
  %v2024 = vunpack.c.l.b16 %v1953
  %v2025 = vunpack.c.l.b16 %v1954
  %v2026 = vunpack.c.l.b16 %v1955
  %v2027 = vunpack.c.l.b16 %v1956
  %v2028 = vunpack.c.l.b16 %v1957
  %v2029 = vunpack.c.l.b16 %v1958
  %v2030 = vunpack.c.l.b16 %v1959
  %v2031 = vunpack.c.l.b16 %v1960
  %v2032 = vunpack.c.l.b16 %v1961
  %v2033 = vunpack.c.l.b16 %v1962
  %v2034 = vunpack.c.l.b16 %v1963
  %v2035 = vunpack.c.l.b16 %v1964
  %v2036 = vunpack.c.l.b16 %v1965
  %v2037 = vunpack.c.l.b16 %v1966
  %v2038 = vunpack.c.l.b16 %v1967
  %v2039 = vunpack.c.l.b16 %v1968
  %v2040 = vunpack.c.l.b16 %v1969
  %v2041 = vunpack.c.l.b16 %v1970
  %v2042 = vunpack.c.l.b16 %v1971
  %v2043 = vunpack.c.l.b16 %v1972
  %v2044 = vunpack.c.l.b16 %v1973
  %v2045 = vunpack.c.l.b16 %v1974
  %v2046 = vunpack.c.l.b16 %v1975
  %v2047 = vunpack.c.l.b16 %v1976
  %v2048 = vunpack.c.l.b16 %v1977
  %v2049 = vunpack.c.l.b16 %v1978
  %v2050 = vunpack.c.l.b16 %v1979
  %v2051 = vunpack.c.l.b16 %v1980
  %v2052 = vunpack.c.l.b16 %v1981
  %v2053 = vunpack.c.l.b16 %v1982
  %v2054 = vunpack.c.l.b16 %v1983
  %v2055 = vpack.c.b16 %v2024, %v2023
  %v2056 = vpack.c.b16 %v2026, %v2025
  %v2057 = vpack.c.b16 %v2028, %v2027
  %v2058 = vpack.c.b16 %v2030, %v2029
  %v2059 = vpack.c.b16 %v2032, %v2031
  %v2060 = vpack.c.b16 %v2034, %v2033
  %v2061 = vpack.c.b16 %v2036, %v2035
  %v2062 = vpack.c.b16 %v2038, %v2037
  %v2063 = vpack.c.b16 %v2040, %v2039
  %v2064 = vpack.c.b16 %v2042, %v2041
  %v2065 = vpack.c.b16 %v2044, %v2043
  %v2066 = vpack.c.b16 %v2046, %v2045
  %v2067 = vpack.c.b16 %v2048, %v2047
  %v2068 = vpack.c.b16 %v2050, %v2049
  %v2069 = vpack.c.b16 %v2052, %v2051
  %v2070 = vpack.c.b16 %v2054, %v2053
  %2087 = vmatprep.subr.bf16.mxu0 0
  %2088 = vmatpush1.bf16.msra.mxu0 %v2055
  %2089 = vmatprep.subr.bf16.mxu0 0
  %2090 = vmatpush1.bf16.msra.mxu0 %v2056
  %2091 = vmatprep.subr.bf16.mxu0 0
  %2092 = vmatpush1.bf16.msra.mxu0 %v2057
  %2093 = vmatprep.subr.bf16.mxu0 0
  %2094 = vmatpush1.bf16.msra.mxu0 %v2058
  %2095 = vmatprep.subr.bf16.mxu0 0
  %2096 = vmatpush1.bf16.msra.mxu0 %v2059
  %2097 = vmatprep.subr.bf16.mxu0 0
  %2098 = vmatpush1.bf16.msra.mxu0 %v2060
  %2099 = vmatprep.subr.bf16.mxu0 0
  %2100 = vmatpush1.bf16.msra.mxu0 %v2061
  %2101 = vmatprep.subr.bf16.mxu0 0
  %2102 = vmatpush1.bf16.msra.mxu0 %v2062
  %2103 = vmatprep.subr.bf16.mxu0 0
  %2104 = vmatpush1.bf16.msra.mxu0 %v2063
  %2105 = vmatprep.subr.bf16.mxu0 0
  %2106 = vmatpush1.bf16.msra.mxu0 %v2064
  %2107 = vmatprep.subr.bf16.mxu0 0
  %2108 = vmatpush1.bf16.msra.mxu0 %v2065
  %2109 = vmatprep.subr.bf16.mxu0 0
  %2110 = vmatpush1.bf16.msra.mxu0 %v2066
  %2111 = vmatprep.subr.bf16.mxu0 0
  %2112 = vmatpush1.bf16.msra.mxu0 %v2067
  %2113 = vmatprep.subr.bf16.mxu0 0
  %2114 = vmatpush1.bf16.msra.mxu0 %v2068
  %2115 = vmatprep.subr.bf16.mxu0 0
  %2116 = vmatpush1.bf16.msra.mxu0 %v2069
  %2117 = vmatprep.subr.bf16.mxu0 0
  %2118 = vmatpush1.bf16.msra.mxu0 %v2070
  %2119 = vmatprep.mubr.bf16.mxu0 %v1949
  %2120 = vmatmul.mubr.bf16.gmra.mrb[0].mxu0 %v1948
  %v2121 = vpop.f32.mrb[0].mxu0
  %v2122 = vadd.f32 %v1989, %v2121
  %v2123 = vpop.f32.mrb[0].mxu0
  %v2124 = vpop.f32.mrb[0].mxu0
  %v2125 = vadd.f32 %v1989, %v2124
  %v2126 = vpop.f32.mrb[0].mxu0
  %2127 = vmatprep.mubr.bf16.mxu0 %v1951
  %2128 = vmatmul.mubr.bf16.gmra.mrb[0].mxu0 %v1950
  %v2129 = vpop.f32.mrb[0].mxu0
  %v2130 = vadd.f32 %v1989, %v2129
  %v2131 = vpop.f32.mrb[0].mxu0
  %v2132 = vpop.f32.mrb[0].mxu0
  %v2133 = vpop.f32.mrb[0].mxu0
  %2134 = vdwg.mxu0
  %v2135 = vadd.f32 %v1699, %v2122
  %v2136 = vadd.f32 %v1700, %v2125
  %v2137 = vadd.f32 %v1701, %v2130
  %2138 = vst [vmem:[%s12] sm:$0xff] %v2135
  %2139 = vst [vmem:[%s12 + $0x8] sm:$0xff] %v2136
  %2140 = vst [vmem:[%s12 + $0x10] sm:$0x3] %v2137
  // Predicated region
  $region50: #{vit_forward.5} parent=0 // pred_check
    _
  $region51: #{vit_forward.5} parent=0 // pred_check_branch
    %2142 = sbr.rel (0) target = $region53
  $region52: #{vit_forward.5} parent=0 // pred_region
    _
  $region53: #{vit_forward.5} parent=0 // pred_fallthru
    _
  // Predicated region
  $region54: #{vit_forward.5} parent=0 // pred_check
    _
  $region55: #{vit_forward.5} parent=0 // pred_check_branch
    %2144 = sbr.rel (0) target = $region57
  $region56: #{vit_forward.5} parent=0 // pred_region
    _
  $region57: #{vit_forward.5} parent=0 // pred_fallthru
    _

</llo_original>
